<compile_context>
chip_gen: v7x
topology: tpu7x:2x2x1
jax: 0.10.0
libtpu: 0.0.40
codegen_flags: <defaults>
</compile_context>

<pallas_src>
import functools

import jax
import jax.numpy as jnp
from jax.experimental import pallas as pl
from jax.experimental.pallas import tpu as pltpu


def _mha_kernel(q_ref, k_ref, v_ref, wq_t_ref, wk_t_ref, wv_t_ref, wfc_ref,
                gamma_ref, beta_ref, *rest, n_head, d_k, d_v, eps, emit_attn):
    if emit_attn:
        out_ref, attn_ref, cat_ref = rest
    else:
        out_ref, cat_ref = rest
        attn_ref = None

    qb = q_ref[0]                      # (tq, d_model) native dtype
    kb = k_ref[0]                      # (L,  d_model)
    vb = v_ref[0]                      # (L,  d_model)

    # x @ W computed as W^T-on-the-left (contract both minor dims): one wide matmul
    # per projection, result is head-major (H*d, seq) so the per-head split is a
    # cheap leading-dim reshape (d_k assumed a multiple of 8, true for real configs).
    dn = (((1,), (1,)), ((), ()))      # contract minor(lhs) with minor(rhs)
    q_t = jax.lax.dot_general(wq_t_ref[...], qb, dn,
                              preferred_element_type=jnp.float32)   # (H*dk, tq)
    k_t = jax.lax.dot_general(wk_t_ref[...], kb, dn,
                              preferred_element_type=jnp.float32)   # (H*dk, L)
    v_t = jax.lax.dot_general(wv_t_ref[...], vb, dn,
                              preferred_element_type=jnp.float32)   # (H*dv, L)

    tq = q_t.shape[1]
    L = k_t.shape[1]
    q_t = q_t * (1.0 / (d_k ** 0.5))   # scale once over the whole Q

    q3 = jnp.swapaxes(q_t.reshape(n_head, d_k, tq), 1, 2)   # (H, tq, dk)
    k3 = k_t.reshape(n_head, d_k, L)                         # (H, dk, L)
    v3 = v_t.reshape(n_head, d_v, L)                         # (H, dv, L)

    # Head-batched attention (single dot_general each, flash-style forms).
    scores = jnp.einsum('hqd,hdk->hqk', q3, k3,
                        preferred_element_type=jnp.float32)   # (H, tq, L)
    m = jnp.max(scores, axis=-1, keepdims=True)
    e = jnp.exp(scores - m)
    # Exact reciprocal keeps softmax numerics tight; approx=True is the cheaper
    # EUP variant if a looser tolerance is acceptable.
    p = e * pl.reciprocal(jnp.sum(e, axis=-1, keepdims=True), approx=False)

    if emit_attn:
        attn_ref[0] = p.astype(attn_ref.dtype)

    head_out = jnp.einsum('hqk,hdk->hqd', p, v3,
                          preferred_element_type=jnp.float32)  # (H, tq, dv)

    # Pack heads into (tq, H*dv) scratch, then ONE full-width fc matmul
    # (contraction K = n_head*d_v instead of n_head matmuls with K = d_v).
    for h in range(n_head):
        cat_ref[:, h * d_v:(h + 1) * d_v] = head_out[h]
    fc = jnp.dot(cat_ref[...], wfc_ref[...],
                 preferred_element_type=jnp.float32)           # (tq, d_model)

    # Residual + LayerNorm(d_model, eps=1e-6).  Dropout is identity (eval mode).
    res = fc + qb.astype(jnp.float32)
    mean = jnp.mean(res, axis=-1, keepdims=True)
    var = jnp.mean((res - mean) ** 2, axis=-1, keepdims=True)
    normed = (res - mean) * jax.lax.rsqrt(var + eps)
    out = (normed * gamma_ref[...].astype(jnp.float32)
           + beta_ref[...].astype(jnp.float32))
    out_ref[0] = out.astype(out_ref.dtype)


def multi_head_attention(q, k, v, params, *, n_head, d_k, d_v,
                         return_attn=True, attn_dtype=jnp.float32):
    """q, k, v: (B, L, d_model). Returns (out (B,L,d_model), attn (B,H,L,L) or None)."""
    B, L, d_model = q.shape
    wq, wk, wv, wfc, gamma, beta = params

    # Parameter re-arrangement done outside the kernel (free in the wrapper).
    wq_t = wq.T                         # (H*dk, d_model)
    wk_t = wk.T
    wv_t = wv.T
    gamma2 = gamma.reshape(1, d_model)
    beta2 = beta.reshape(1, d_model)

    # Query-tile size: 256-tall tiles keep the v6e/v7x 256-wide MXU busy and bound
    # per-step VMEM; small L degenerates to a single tile.
    if L % 256 == 0:
        tq = 256
    elif L % 128 == 0:
        tq = 128
    else:
        tq = L
    grid = (B, L // tq)

    kernel = functools.partial(_mha_kernel, n_head=n_head, d_k=d_k, d_v=d_v,
                               eps=1e-6, emit_attn=return_attn)

    def full(shape):
        return pl.BlockSpec(shape, lambda b, i: tuple(0 for _ in shape))

    in_specs = [
        pl.BlockSpec((1, tq, d_model), lambda b, i: (b, i, 0)),   # q tile
        pl.BlockSpec((1, L, d_model), lambda b, i: (b, 0, 0)),    # k (full seq)
        pl.BlockSpec((1, L, d_model), lambda b, i: (b, 0, 0)),    # v (full seq)
        full(wq_t.shape), full(wk_t.shape), full(wv_t.shape),
        full(wfc.shape), full(gamma2.shape), full(beta2.shape),
    ]
    out_shape = [jax.ShapeDtypeStruct((B, L, d_model), q.dtype)]
    out_specs = [pl.BlockSpec((1, tq, d_model), lambda b, i: (b, i, 0))]
    if return_attn:
        out_shape.append(jax.ShapeDtypeStruct((B, n_head, L, L), attn_dtype))
        out_specs.append(pl.BlockSpec((1, n_head, tq, L), lambda b, i: (b, 0, i, 0)))

    results = pl.pallas_call(
        kernel,
        out_shape=tuple(out_shape),
        grid_spec=pltpu.PrefetchScalarGridSpec(
            num_scalar_prefetch=0,
            grid=grid,
            in_specs=in_specs,
            out_specs=out_specs,
            scratch_shapes=[pltpu.VMEM((tq, n_head * d_v), jnp.float32)],
        ),
        compiler_params=pltpu.CompilerParams(
            dimension_semantics=("parallel", "parallel"),
            vmem_limit_bytes=48 * 1024 * 1024,
        ),
    )(q, k, v, wq_t, wk_t, wv_t, wfc, gamma2, beta2)

    if return_attn:
        out, attn = results
        return out, attn
    (out,) = results
    return out, None


def reference_mha(q, k, v, params, *, n_head, d_k, d_v):
    """Pure-JAX reference mirroring the PyTorch forward (eval mode, mask=None)."""
    B, L, d_model = q.shape
    wq, wk, wv, wfc, gamma, beta = params
    residual = q
    Q = (q @ wq).reshape(B, L, n_head, d_k).transpose(0, 2, 1, 3)
    K = (k @ wk).reshape(B, L, n_head, d_k).transpose(0, 2, 1, 3)
    V = (v @ wv).reshape(B, L, n_head, d_v).transpose(0, 2, 1, 3)
    scores = jnp.einsum("bhqd,bhkd->bhqk", Q / (d_k ** 0.5), K)
    attn = jax.nn.softmax(scores, axis=-1)
    o = jnp.einsum("bhqk,bhkd->bhqd", attn, V)
    o = o.transpose(0, 2, 1, 3).reshape(B, L, n_head * d_v)
    o = o @ wfc + residual
    mean = jnp.mean(o, axis=-1, keepdims=True)
    var = jnp.mean((o - mean) ** 2, axis=-1, keepdims=True)
    o = (o - mean) * jax.lax.rsqrt(var + 1e-6) * gamma + beta
    return o, attn


if __name__ == "__main__":
    B, L, d_model = 2, 8, 32
    n_head, d_k, d_v = 4, 8, 8

    key = jax.random.PRNGKey(0)
    kq, kk, kv, k1, k2, k3, k4 = jax.random.split(key, 7)
    q = jax.random.normal(kq, (B, L, d_model), jnp.float32)
    k = jax.random.normal(kk, (B, L, d_model), jnp.float32)
    v = jax.random.normal(kv, (B, L, d_model), jnp.float32)

    # Weights stored as (in, out); PyTorch stores (out, in) and applies x @ W.T —
    # equivalent up to this explicit construction.
    s = 0.1
    wq_w = s * jax.random.normal(k1, (d_model, n_head * d_k), jnp.float32)
    wk_w = s * jax.random.normal(k2, (d_model, n_head * d_k), jnp.float32)
    wv_w = s * jax.random.normal(k3, (d_model, n_head * d_k), jnp.float32)
    wfc_w = s * jax.random.normal(k4, (n_head * d_v, d_model), jnp.float32)
    gamma = jnp.ones((d_model,), jnp.float32)
    beta = jnp.zeros((d_model,), jnp.float32)
    params = (wq_w, wk_w, wv_w, wfc_w, gamma, beta)

    out, attn = multi_head_attention(q, k, v, params,
                                     n_head=n_head, d_k=d_k, d_v=d_v,
                                     return_attn=True)
    out = jax.block_until_ready(out)
    attn = jax.block_until_ready(attn)

    ref_out, ref_attn = reference_mha(q, k, v, params,
                                      n_head=n_head, d_k=d_k, d_v=d_v)
    assert out.shape == (B, L, d_model) and attn.shape == (B, n_head, L, L)
    assert jnp.allclose(out, ref_out, atol=1e-4, rtol=1e-4)
    assert jnp.allclose(attn, ref_attn, atol=1e-4, rtol=1e-4)

    print("KERNEL_OK")
</pallas_src>

<mosaic_0001>
module attributes {stable_mosaic.version = 11 : i64} {
  func.func @_mha_kernel(%arg0: i32, %arg1: i32, %arg2: memref<1x8x32xf32, #tpu.memory_space<vmem>>, %arg3: memref<1x8x32xf32, #tpu.memory_space<vmem>>, %arg4: memref<1x8x32xf32, #tpu.memory_space<vmem>>, %arg5: memref<32x32xf32, #tpu.memory_space<vmem>>, %arg6: memref<32x32xf32, #tpu.memory_space<vmem>>, %arg7: memref<32x32xf32, #tpu.memory_space<vmem>>, %arg8: memref<32x32xf32, #tpu.memory_space<vmem>>, %arg9: memref<1x32xf32, #tpu.memory_space<vmem>>, %arg10: memref<1x32xf32, #tpu.memory_space<vmem>>, %arg11: memref<1x8x32xf32, #tpu.memory_space<vmem>>, %arg12: memref<1x4x8x8xf32, #tpu.memory_space<vmem>>, %arg13: memref<8x32xf32, #tpu.memory_space<vmem>>) attributes {dimension_semantics = [#tpu.dimension_semantics<parallel>, #tpu.dimension_semantics<parallel>], iteration_bounds = array<i64: 2, 1>, scalar_prefetch = 0 : i64, scratch_operands = 1 : i64, tpu.core_type = #tpu.core_type<tc>, window_params = [{transform_indices = @transform_0, window_bounds = array<i64: 1, 8, 32>}, {transform_indices = @transform_1, window_bounds = array<i64: 1, 8, 32>}, {transform_indices = @transform_2, window_bounds = array<i64: 1, 8, 32>}, {pipeline_mode = #tpu.pipeline_mode<synchronous>, transform_indices = @transform_3, window_bounds = array<i64: 32, 32>}, {pipeline_mode = #tpu.pipeline_mode<synchronous>, transform_indices = @transform_4, window_bounds = array<i64: 32, 32>}, {pipeline_mode = #tpu.pipeline_mode<synchronous>, transform_indices = @transform_5, window_bounds = array<i64: 32, 32>}, {pipeline_mode = #tpu.pipeline_mode<synchronous>, transform_indices = @transform_6, window_bounds = array<i64: 32, 32>}, {pipeline_mode = #tpu.pipeline_mode<synchronous>, transform_indices = @transform_7, window_bounds = array<i64: 1, 32>}, {pipeline_mode = #tpu.pipeline_mode<synchronous>, transform_indices = @transform_8, window_bounds = array<i64: 1, 32>}, {transform_indices = @transform_9, window_bounds = array<i64: 1, 8, 32>}, {transform_indices = @transform_10, window_bounds = array<i64: 1, 4, 8, 8>}]} {
    %c0 = arith.constant 0 : index
    %c0_0 = arith.constant 0 : index
    %c0_1 = arith.constant 0 : index
    %0 = vector.load %arg2[%c0, %c0_0, %c0_1] : memref<1x8x32xf32, #tpu.memory_space<vmem>>, vector<1x8x32xf32>
    %1 = vector.shape_cast %0 : vector<1x8x32xf32> to vector<8x32xf32>
    %c0_2 = arith.constant 0 : index
    %c0_3 = arith.constant 0 : index
    %c0_4 = arith.constant 0 : index
    %2 = vector.load %arg3[%c0_2, %c0_3, %c0_4] : memref<1x8x32xf32, #tpu.memory_space<vmem>>, vector<1x8x32xf32>
    %3 = vector.shape_cast %2 : vector<1x8x32xf32> to vector<8x32xf32>
    %c0_5 = arith.constant 0 : index
    %c0_6 = arith.constant 0 : index
    %c0_7 = arith.constant 0 : index
    %4 = vector.load %arg4[%c0_5, %c0_6, %c0_7] : memref<1x8x32xf32, #tpu.memory_space<vmem>>, vector<1x8x32xf32>
    %5 = vector.shape_cast %4 : vector<1x8x32xf32> to vector<8x32xf32>
    %c0_8 = arith.constant 0 : index
    %c0_9 = arith.constant 0 : index
    %6 = vector.load %arg5[%c0_8, %c0_9] : memref<32x32xf32, #tpu.memory_space<vmem>>, vector<32x32xf32>
    %cst = arith.constant dense<0.000000e+00> : vector<32x8xf32>
    %7 = tpu.matmul %6, %1, %cst {dimension_numbers = #tpu.dot_dimension_numbers<[1], [1], [0], [0], [0, 0, 1, 0], [], []>} : vector<32x32xf32>, vector<8x32xf32>, vector<32x8xf32> -> vector<32x8xf32>
    %c0_10 = arith.constant 0 : index
    %c0_11 = arith.constant 0 : index
    %8 = vector.load %arg6[%c0_10, %c0_11] : memref<32x32xf32, #tpu.memory_space<vmem>>, vector<32x32xf32>
    %cst_12 = arith.constant dense<0.000000e+00> : vector<32x8xf32>
    %9 = tpu.matmul %8, %3, %cst_12 {dimension_numbers = #tpu.dot_dimension_numbers<[1], [1], [0], [0], [0, 0, 1, 0], [], []>} : vector<32x32xf32>, vector<8x32xf32>, vector<32x8xf32> -> vector<32x8xf32>
    %c0_13 = arith.constant 0 : index
    %c0_14 = arith.constant 0 : index
    %10 = vector.load %arg7[%c0_13, %c0_14] : memref<32x32xf32, #tpu.memory_space<vmem>>, vector<32x32xf32>
    %cst_15 = arith.constant dense<0.000000e+00> : vector<32x8xf32>
    %11 = tpu.matmul %10, %5, %cst_15 {dimension_numbers = #tpu.dot_dimension_numbers<[1], [1], [0], [0], [0, 0, 1, 0], [], []>} : vector<32x32xf32>, vector<8x32xf32>, vector<32x8xf32> -> vector<32x8xf32>
    %cst_16 = arith.constant 0.353553385 : f32
    %12 = vector.broadcast %cst_16 : f32 to vector<32x8xf32>
    %13 = arith.mulf %7, %12 : vector<32x8xf32>
    %14 = vector.shape_cast %13 : vector<32x8xf32> to vector<4x8x8xf32>
    %15 = tpu.transpose %14, [0, 2, 1] : vector<4x8x8xf32> -> vector<4x8x8xf32>
    %16 = vector.shape_cast %9 : vector<32x8xf32> to vector<4x8x8xf32>
    %17 = vector.shape_cast %11 : vector<32x8xf32> to vector<4x8x8xf32>
    "tpu.trace_start"() <{level = 10 : i32, message = "hqd,hdk->hqk"}> : () -> ()
    %cst_17 = arith.constant dense<0.000000e+00> : vector<4x8x8xf32>
    %18 = tpu.matmul %15, %16, %cst_17 {dimension_numbers = #tpu.dot_dimension_numbers<[2], [1], [1], [2], [0, 0, 0, 1, 1, 2], [0], [0]>} : vector<4x8x8xf32>, vector<4x8x8xf32>, vector<4x8x8xf32> -> vector<4x8x8xf32>
    "tpu.trace_stop"() : () -> ()
    %cst_18 = arith.constant dense<0xFF800000> : vector<4x8xf32>
    %19 = vector.multi_reduction <maximumf>, %18, %cst_18 [2] : vector<4x8x8xf32> to vector<4x8xf32>
    %20 = vector.shape_cast %19 : vector<4x8xf32> to vector<4x8x1xf32>
    %21 = vector.broadcast %20 : vector<4x8x1xf32> to vector<4x8x8xf32>
    %22 = arith.subf %18, %21 : vector<4x8x8xf32>
    %23 = math.exp %22 : vector<4x8x8xf32>
    %cst_19 = arith.constant dense<0.000000e+00> : vector<4x8xf32>
    %24 = vector.multi_reduction <add>, %23, %cst_19 [2] : vector<4x8x8xf32> to vector<4x8xf32>
    %25 = vector.shape_cast %24 : vector<4x8xf32> to vector<4x8x1xf32>
    %26 = tpu.reciprocal %25 : vector<4x8x1xf32> -> vector<4x8x1xf32>
    %27 = vector.broadcast %26 : vector<4x8x1xf32> to vector<4x8x8xf32>
    %28 = arith.mulf %23, %27 : vector<4x8x8xf32>
    %c0_20 = arith.constant 0 : index
    %c0_21 = arith.constant 0 : index
    %c0_22 = arith.constant 0 : index
    %c0_23 = arith.constant 0 : index
    %29 = vector.load %arg12[%c0_20, %c0_21, %c0_22, %c0_23] : memref<1x4x8x8xf32, #tpu.memory_space<vmem>>, vector<1x4x8x8xf32>
    %30 = vector.shape_cast %29 : vector<1x4x8x8xf32> to vector<4x8x8xf32>
    %31 = vector.shape_cast %28 : vector<4x8x8xf32> to vector<1x4x8x8xf32>
    tpu.vector_store %arg12[%c0_20, %c0_21, %c0_22, %c0_23], %31 {strides = array<i32>} : memref<1x4x8x8xf32, #tpu.memory_space<vmem>>, vector<1x4x8x8xf32>,
    "tpu.trace_start"() <{level = 10 : i32, message = "hqk,hdk->hqd"}> : () -> ()
    %cst_24 = arith.constant dense<0.000000e+00> : vector<4x8x8xf32>
    %32 = tpu.matmul %28, %17, %cst_24 {dimension_numbers = #tpu.dot_dimension_numbers<[2], [2], [1], [1], [0, 0, 0, 1, 1, 1], [0], [0]>} : vector<4x8x8xf32>, vector<4x8x8xf32>, vector<4x8x8xf32> -> vector<4x8x8xf32>
    "tpu.trace_stop"() : () -> ()
    %33 = vector.extract_strided_slice %32 {offsets = [0, 0, 0], sizes = [1, 8, 8], strides = [1, 1, 1]} : vector<4x8x8xf32> to vector<1x8x8xf32>
    %34 = vector.shape_cast %33 : vector<1x8x8xf32> to vector<8x8xf32>
    %c0_25 = arith.constant 0 : index
    %c0_26 = arith.constant 0 : index
    %35 = vector.load %arg13[%c0_25, %c0_26] : memref<8x32xf32, #tpu.memory_space<vmem>>, vector<8x8xf32>
    tpu.vector_store %arg13[%c0_25, %c0_26], %34 {strides = array<i32>} : memref<8x32xf32, #tpu.memory_space<vmem>>, vector<8x8xf32>,
    %36 = vector.extract_strided_slice %32 {offsets = [1, 0, 0], sizes = [1, 8, 8], strides = [1, 1, 1]} : vector<4x8x8xf32> to vector<1x8x8xf32>
    %37 = vector.shape_cast %36 : vector<1x8x8xf32> to vector<8x8xf32>
    %c0_27 = arith.constant 0 : index
    %c8 = arith.constant 8 : index
    %38 = vector.load %arg13[%c0_27, %c8] : memref<8x32xf32, #tpu.memory_space<vmem>>, vector<8x8xf32>
    tpu.vector_store %arg13[%c0_27, %c8], %37 {strides = array<i32>} : memref<8x32xf32, #tpu.memory_space<vmem>>, vector<8x8xf32>,
    %39 = vector.extract_strided_slice %32 {offsets = [2, 0, 0], sizes = [1, 8, 8], strides = [1, 1, 1]} : vector<4x8x8xf32> to vector<1x8x8xf32>
    %40 = vector.shape_cast %39 : vector<1x8x8xf32> to vector<8x8xf32>
    %c0_28 = arith.constant 0 : index
    %c16 = arith.constant 16 : index
    %41 = vector.load %arg13[%c0_28, %c16] : memref<8x32xf32, #tpu.memory_space<vmem>>, vector<8x8xf32>
    tpu.vector_store %arg13[%c0_28, %c16], %40 {strides = array<i32>} : memref<8x32xf32, #tpu.memory_space<vmem>>, vector<8x8xf32>,
    %42 = vector.extract_strided_slice %32 {offsets = [3, 0, 0], sizes = [1, 8, 8], strides = [1, 1, 1]} : vector<4x8x8xf32> to vector<1x8x8xf32>
    %43 = vector.shape_cast %42 : vector<1x8x8xf32> to vector<8x8xf32>
    %c0_29 = arith.constant 0 : index
    %c24 = arith.constant 24 : index
    %44 = vector.load %arg13[%c0_29, %c24] : memref<8x32xf32, #tpu.memory_space<vmem>>, vector<8x8xf32>
    tpu.vector_store %arg13[%c0_29, %c24], %43 {strides = array<i32>} : memref<8x32xf32, #tpu.memory_space<vmem>>, vector<8x8xf32>,
    %c0_30 = arith.constant 0 : index
    %c0_31 = arith.constant 0 : index
    %45 = vector.load %arg13[%c0_30, %c0_31] : memref<8x32xf32, #tpu.memory_space<vmem>>, vector<8x32xf32>
    %c0_32 = arith.constant 0 : index
    %c0_33 = arith.constant 0 : index
    %46 = vector.load %arg8[%c0_32, %c0_33] : memref<32x32xf32, #tpu.memory_space<vmem>>, vector<32x32xf32>
    %cst_34 = arith.constant dense<0.000000e+00> : vector<8x32xf32>
    %47 = tpu.matmul %45, %46, %cst_34 {dimension_numbers = #tpu.dot_dimension_numbers<[1], [0], [0], [1], [0, 0, 1, 1], [], []>} : vector<8x32xf32>, vector<32x32xf32>, vector<8x32xf32> -> vector<8x32xf32>
    %48 = arith.addf %47, %1 : vector<8x32xf32>
    %cst_35 = arith.constant dense<0.000000e+00> : vector<8xf32>
    %49 = vector.multi_reduction <add>, %48, %cst_35 [1] : vector<8x32xf32> to vector<8xf32>
    %50 = vector.shape_cast %49 : vector<8xf32> to vector<8x1xf32>
    %cst_36 = arith.constant 3.200000e+01 : f32
    %51 = vector.broadcast %cst_36 : f32 to vector<8x1xf32>
    %52 = arith.divf %50, %51 : vector<8x1xf32>
    %53 = vector.broadcast %52 : vector<8x1xf32> to vector<8x32xf32>
    %54 = arith.subf %48, %53 : vector<8x32xf32>
    %55 = arith.mulf %54, %54 : vector<8x32xf32>
    %cst_37 = arith.constant dense<0.000000e+00> : vector<8xf32>
    %56 = vector.multi_reduction <add>, %55, %cst_37 [1] : vector<8x32xf32> to vector<8xf32>
    %57 = vector.shape_cast %56 : vector<8xf32> to vector<8x1xf32>
    %cst_38 = arith.constant 3.200000e+01 : f32
    %58 = vector.broadcast %cst_38 : f32 to vector<8x1xf32>
    %59 = arith.divf %57, %58 : vector<8x1xf32>
    %60 = vector.broadcast %52 : vector<8x1xf32> to vector<8x32xf32>
    %61 = arith.subf %48, %60 : vector<8x32xf32>
    %cst_39 = arith.constant 9.99999997E-7 : f32
    %62 = vector.broadcast %cst_39 : f32 to vector<8x1xf32>
    %63 = arith.addf %59, %62 : vector<8x1xf32>
    %64 = math.rsqrt %63 : vector<8x1xf32>
    %65 = vector.broadcast %64 : vector<8x1xf32> to vector<8x32xf32>
    %66 = arith.mulf %61, %65 : vector<8x32xf32>
    %c0_40 = arith.constant 0 : index
    %c0_41 = arith.constant 0 : index
    %67 = vector.load %arg9[%c0_40, %c0_41] : memref<1x32xf32, #tpu.memory_space<vmem>>, vector<1x32xf32>
    %68 = vector.broadcast %67 : vector<1x32xf32> to vector<8x32xf32>
    %69 = arith.mulf %66, %68 : vector<8x32xf32>
    %c0_42 = arith.constant 0 : index
    %c0_43 = arith.constant 0 : index
    %70 = vector.load %arg10[%c0_42, %c0_43] : memref<1x32xf32, #tpu.memory_space<vmem>>, vector<1x32xf32>
    %71 = vector.broadcast %70 : vector<1x32xf32> to vector<8x32xf32>
    %72 = arith.addf %69, %71 : vector<8x32xf32>
    %c0_44 = arith.constant 0 : index
    %c0_45 = arith.constant 0 : index
    %c0_46 = arith.constant 0 : index
    %73 = vector.load %arg11[%c0_44, %c0_45, %c0_46] : memref<1x8x32xf32, #tpu.memory_space<vmem>>, vector<1x8x32xf32>
    %74 = vector.shape_cast %73 : vector<1x8x32xf32> to vector<8x32xf32>
    %75 = vector.shape_cast %72 : vector<8x32xf32> to vector<1x8x32xf32>
    tpu.vector_store %arg11[%c0_44, %c0_45, %c0_46], %75 {strides = array<i32>} : memref<1x8x32xf32, #tpu.memory_space<vmem>>, vector<1x8x32xf32>,
    return
  }
  func.func @transform_0(%arg0: i32, %arg1: i32) -> (i32, i32, i32) {
    %c0_i32 = arith.constant 0 : i32
    %c0_i32_0 = arith.constant 0 : i32
    return %arg0, %arg1, %c0_i32 : i32, i32, i32
  }
  func.func @transform_1(%arg0: i32, %arg1: i32) -> (i32, i32, i32) {
    %c0_i32 = arith.constant 0 : i32
    %c0_i32_0 = arith.constant 0 : i32
    %c0_i32_1 = arith.constant 0 : i32
    return %arg0, %c0_i32, %c0_i32_0 : i32, i32, i32
  }
  func.func @transform_2(%arg0: i32, %arg1: i32) -> (i32, i32, i32) {
    %c0_i32 = arith.constant 0 : i32
    %c0_i32_0 = arith.constant 0 : i32
    %c0_i32_1 = arith.constant 0 : i32
    return %arg0, %c0_i32, %c0_i32_0 : i32, i32, i32
  }
  func.func @transform_3(%arg0: i32, %arg1: i32) -> (i32, i32) {
    %c0_i32 = arith.constant 0 : i32
    %c0_i32_0 = arith.constant 0 : i32
    %c0_i32_1 = arith.constant 0 : i32
    return %c0_i32, %c0_i32_0 : i32, i32
  }
  func.func @transform_4(%arg0: i32, %arg1: i32) -> (i32, i32) {
    %c0_i32 = arith.constant 0 : i32
    %c0_i32_0 = arith.constant 0 : i32
    %c0_i32_1 = arith.constant 0 : i32
    return %c0_i32, %c0_i32_0 : i32, i32
  }
  func.func @transform_5(%arg0: i32, %arg1: i32) -> (i32, i32) {
    %c0_i32 = arith.constant 0 : i32
    %c0_i32_0 = arith.constant 0 : i32
    %c0_i32_1 = arith.constant 0 : i32
    return %c0_i32, %c0_i32_0 : i32, i32
  }
  func.func @transform_6(%arg0: i32, %arg1: i32) -> (i32, i32) {
    %c0_i32 = arith.constant 0 : i32
    %c0_i32_0 = arith.constant 0 : i32
    %c0_i32_1 = arith.constant 0 : i32
    return %c0_i32, %c0_i32_0 : i32, i32
  }
  func.func @transform_7(%arg0: i32, %arg1: i32) -> (i32, i32) {
    %c0_i32 = arith.constant 0 : i32
    %c0_i32_0 = arith.constant 0 : i32
    %c0_i32_1 = arith.constant 0 : i32
    return %c0_i32, %c0_i32_0 : i32, i32
  }
  func.func @transform_8(%arg0: i32, %arg1: i32) -> (i32, i32) {
    %c0_i32 = arith.constant 0 : i32
    %c0_i32_0 = arith.constant 0 : i32
    %c0_i32_1 = arith.constant 0 : i32
    return %c0_i32, %c0_i32_0 : i32, i32
  }
  func.func @transform_9(%arg0: i32, %arg1: i32) -> (i32, i32, i32) {
    %c0_i32 = arith.constant 0 : i32
    %c0_i32_0 = arith.constant 0 : i32
    return %arg0, %arg1, %c0_i32 : i32, i32, i32
  }
  func.func @transform_10(%arg0: i32, %arg1: i32) -> (i32, i32, i32, i32) {
    %c0_i32 = arith.constant 0 : i32
    %c0_i32_0 = arith.constant 0 : i32
    %c0_i32_1 = arith.constant 0 : i32
    return %arg0, %c0_i32, %arg1, %c0_i32_0 : i32, i32, i32, i32
  }
}

</mosaic_0001>

<llo_original>
// kernel: tpu_custom_call.1
$region0: #{tpu_custom_call.1}
  #allocation0 [shape = 'u32[]', space=smem, size = 0x4, offset = 0x4, fixed_abs, tag = 'smem constant byte address 0x4 - core index']
  #allocation1 [shape = 'u32[144,128]{1,0:T(1,128)}', space=vmem, size = 0x12000, scoped, tag = 'internal scratch']
  #allocation2 [shape = 'f32[8,32]{1,0:T(8,128)}', space=vmem, size = 0x1000, scoped, tag = 'scratch operand']
  %s0 = inlined_call_operand.hbm [shape: f32[2,8,32], index: 0, kind: input, shape index: {}]
  %s1 = inlined_call_operand.hbm [shape: f32[2,8,32], index: 1, kind: input, shape index: {}]
  %s2 = inlined_call_operand.hbm [shape: f32[2,8,32], index: 2, kind: input, shape index: {}]
  %s3 = inlined_call_operand.hbm [shape: f32[32,32], index: 3, kind: input, shape index: {}]
  %s4 = inlined_call_operand.hbm [shape: f32[32,32], index: 4, kind: input, shape index: {}]
  %s5 = inlined_call_operand.hbm [shape: f32[32,32], index: 5, kind: input, shape index: {}]
  %s6 = inlined_call_operand.hbm [shape: f32[32,32], index: 6, kind: input, shape index: {}]
  %s7 = inlined_call_operand.vmem [shape: f32[1,32], index: 7, kind: input, shape index: {}]
  %s8 = inlined_call_operand.vmem [shape: f32[1,32], index: 8, kind: input, shape index: {}]
  %s9 = inlined_call_operand.hbm [shape: f32[2,8,32], index: 9, kind: output, shape index: {0}]
  %s10 = inlined_call_operand.hbm [shape: f32[2,4,8,8], index: 10, kind: output, shape index: {1}]
  %11 = xla_tuple %s9, %s10
  %s12 = sld [smem:[#allocation0]]
  $region105: #{tpu_custom_call.1} parent=0
    _
  %s14 = ssub.s32 1, %s12
  %s15 = scalar_select 0, %s14, %s12
  $region1: #{tpu_custom_call.1} parent=0
    #allocation3 [shape = 'u8[8192]{0}', space=vmem, size = 0x2000, scoped, tag = 'input window, operand 0']
    #allocation4 [shape = 's32[2]{0}', space=sflag, size = 0x8, scoped, tag = 'scoped memory for tpu_custom_call.1']
    #allocation5 [shape = 's32[2]{0}', space=sflag, size = 0x8, scoped, tag = 'scoped memory for tpu_custom_call.1']
    #allocation6 [shape = 'u8[8192]{0}', space=vmem, size = 0x2000, scoped, tag = 'input window, operand 1']
    #allocation7 [shape = 's32[2]{0}', space=sflag, size = 0x8, scoped, tag = 'scoped memory for tpu_custom_call.1']
    #allocation8 [shape = 'u8[8192]{0}', space=vmem, size = 0x2000, scoped, tag = 'input window, operand 2']
    #allocation9 [shape = 'u8[16384]{0}', space=vmem, size = 0x4000, scoped, tag = 'input window, operand 3, single buffered']
    #allocation10 [shape = 's32[1]{0}', space=sflag, size = 0x4, scoped, tag = 'scoped memory for tpu_custom_call.1']
    #allocation11 [shape = 'u8[16384]{0}', space=vmem, size = 0x4000, scoped, tag = 'input window, operand 4, single buffered']
    #allocation12 [shape = 'u8[16384]{0}', space=vmem, size = 0x4000, scoped, tag = 'input window, operand 5, single buffered']
    #allocation13 [shape = 's32[1]{0}', space=sflag, size = 0x4, scoped, tag = 'scoped memory for tpu_custom_call.1']
    #allocation14 [shape = 'u8[16384]{0}', space=vmem, size = 0x4000, scoped, tag = 'input window, operand 6, single buffered']
    #allocation15 [shape = 'u8[8192]{0}', space=vmem, size = 0x2000, scoped, tag = 'output window, operand 0']
    #allocation16 [shape = 'u8[32768]{0}', space=vmem, size = 0x8000, scoped, tag = 'output window, operand 1']
    #allocation17 [shape = 's32[2]{0}', space=sflag, size = 0x8, scoped, tag = 'scoped memory for tpu_custom_call.1']
    %16 = vsyncpa [#allocation4], 0
    %s17 = scalar_lea.sflag [#allocation4], 1
    %18 = vsyncpa %s17, 0
    %19 = vsyncpa [#allocation7], 0
    %s20 = scalar_lea.sflag [#allocation7], 1
    %21 = vsyncpa %s20, 0
    %22 = vsyncpa [#allocation10], 0
    %23 = vsyncpa [#allocation13], 0
    %24 = vsyncpa [#allocation5], 0
    %s25 = scalar_lea.sflag [#allocation5], 1
    %26 = vsyncpa %s25, 0
    %27 = vsyncpa [#allocation17], 0
    %s28 = scalar_lea.sflag [#allocation17], 1
    %29 = vsyncpa %s28, 0
    loop: start=0, step=1, limit=4
    $region2: #{tpu_custom_call.1} parent=1 // loop_pre_header
      _
    $region3: #{tpu_custom_call.1} parent=1 // loop_header
      %s31 = sphi 0, %s35
      %p32 = scmp.ge.s32.totalorder %s31, 4
      %s38 = sphi 0, %s50
      %s39 = sphi 0, %s46
      %s40 = sphi 0, %s38
      %s41 = sphi 0, %s39
      %s42 = sphi 0, %s40
      %s43 = sphi 0, %s41
      %s55 = sphi 0, %s57
      %s58 = sphi 0, %s55
      %s59 = sphi 0, %s58
      %s75 = sphi 0, %s59
      %s81 = sphi 0, %s83
      %s84 = sphi 0, %s81
      %s85 = sphi 0, %s84
      %s101 = sphi 0, %s85
      %s107 = sphi 0, %s109
      %s110 = sphi 0, %s107
      %s111 = sphi 0, %s110
      %s127 = sphi 0, %s111
      %s131 = sphi 0, %s131
      %s133 = sphi 0, %s131
      %s134 = sphi 0, %s133
      %s148 = sphi 0, %s134
      %s152 = sphi 0, %s152
      %s154 = sphi 0, %s152
      %s155 = sphi 0, %s154
      %s169 = sphi 0, %s155
      %s173 = sphi 0, %s173
      %s175 = sphi 0, %s173
      %s176 = sphi 0, %s175
      %s190 = sphi 0, %s176
      %s194 = sphi 0, %s194
      %s196 = sphi 0, %s194
      %s197 = sphi 0, %s196
      %s211 = sphi 0, %s197
      %s215 = sphi 0, %s215
      %s217 = sphi 0, %s215
      %s218 = sphi 0, %s217
      %s232 = sphi 0, %s218
      %s236 = sphi 0, %s236
      %s238 = sphi 0, %s236
      %s239 = sphi 0, %s238
      %s253 = sphi 0, %s239
      %s261 = sphi 0, %s263
      %s264 = sphi 0, %s261
      %s265 = sphi 0, %s264
      %s281 = sphi 0, %s265
      %s289 = sphi 0, %s291
      %s292 = sphi 0, %s289
      %s293 = sphi 0, %s292
      %s309 = sphi 0, %s293
    $region4: #{tpu_custom_call.1} parent=1 // loop_header_branch
      %34 = sbr.rel (%p32) target = $region8
    $region5: #{tpu_custom_call.1} parent=1 // loop_body
      %s36 = ssub.s32 %s31, 1
      %s37 = ssub.s32 %s31, 2
      %s44 = sadd.s32 1, %s39
      %p45 = scmp.ge.s32.totalorder %s44, 1
      %s46 = scalar_select %p45, 0, %s44
      %s47 = sadd.s32 1, %s38
      %s48 = scalar_select %p45, %s47, %s38
      %p49 = scmp.ge.s32.totalorder %s48, 2
      %s50 = scalar_select %p49, 0, %s48
      %s51 = ssub.s32 %s38, %s50
      %s52 = ssub.s32 %s39, %s46
      %s53 = sor.u32 %s51, %s52
      %p54 = scmp.eq.s32.totalorder %s53, 0
      %s56 = sadd.s32 %s55, 1
      %s57 = scalar_select %p54, %s55, %s56
      %p60 = pneg %p54
      %p61 = scmp.eq.s32.totalorder %s31, 1
      %p62 = por %p60, %p61
      %p63 = scmp.ne.s32.totalorder %s55, %s58
      %p64 = scmp.eq.s32.totalorder %s31, 0
      %p65 = por %p63, %p64
      %p66 = scmp.ne.s32.totalorder %s55, %s58
      %p67 = scmp.eq.s32.totalorder %s36, 1
      %p68 = por %p66, %p67
      %p69 = scmp.ne.s32.totalorder %s58, %s59
      %p70 = scmp.eq.s32.totalorder %s36, 0
      %p71 = por %p69, %p70
      %p72 = scmp.ne.s32.totalorder %s58, %s59
      %p73 = scmp.eq.s32.totalorder %s37, 1
      %p74 = por %p72, %p73
      %p76 = scmp.ne.s32.totalorder %s59, %s75
      %p77 = scmp.eq.s32.totalorder %s37, 0
      %p78 = por %p76, %p77
      %s79 = ssub.s32 %s38, %s50
      %p80 = scmp.eq.s32.totalorder %s79, 0
      %s82 = sadd.s32 %s81, 1
      %s83 = scalar_select %p80, %s81, %s82
      %p86 = pneg %p80
      %p87 = scmp.eq.s32.totalorder %s31, 1
      %p88 = por %p86, %p87
      %p89 = scmp.ne.s32.totalorder %s81, %s84
      %p90 = scmp.eq.s32.totalorder %s31, 0
      %p91 = por %p89, %p90
      %p92 = scmp.ne.s32.totalorder %s81, %s84
      %p93 = scmp.eq.s32.totalorder %s36, 1
      %p94 = por %p92, %p93
      %p95 = scmp.ne.s32.totalorder %s84, %s85
      %p96 = scmp.eq.s32.totalorder %s36, 0
      %p97 = por %p95, %p96
      %p98 = scmp.ne.s32.totalorder %s84, %s85
      %p99 = scmp.eq.s32.totalorder %s37, 1
      %p100 = por %p98, %p99
      %p102 = scmp.ne.s32.totalorder %s85, %s101
      %p103 = scmp.eq.s32.totalorder %s37, 0
      %p104 = por %p102, %p103
      %s105 = ssub.s32 %s38, %s50
      %p106 = scmp.eq.s32.totalorder %s105, 0
      %s108 = sadd.s32 %s107, 1
      %s109 = scalar_select %p106, %s107, %s108
      %p112 = pneg %p106
      %p113 = scmp.eq.s32.totalorder %s31, 1
      %p114 = por %p112, %p113
      %p115 = scmp.ne.s32.totalorder %s107, %s110
      %p116 = scmp.eq.s32.totalorder %s31, 0
      %p117 = por %p115, %p116
      %p118 = scmp.ne.s32.totalorder %s107, %s110
      %p119 = scmp.eq.s32.totalorder %s36, 1
      %p120 = por %p118, %p119
      %p121 = scmp.ne.s32.totalorder %s110, %s111
      %p122 = scmp.eq.s32.totalorder %s36, 0
      %p123 = por %p121, %p122
      %p124 = scmp.ne.s32.totalorder %s110, %s111
      %p125 = scmp.eq.s32.totalorder %s37, 1
      %p126 = por %p124, %p125
      %p128 = scmp.ne.s32.totalorder %s111, %s127
      %p129 = scmp.eq.s32.totalorder %s37, 0
      %p130 = por %p128, %p129
      %s132 = sadd.s32 %s131, 1
      %p135 = scmp.eq.s32.totalorder %s31, 1
      %p136 = scmp.ne.s32.totalorder %s131, %s133
      %p137 = scmp.eq.s32.totalorder %s31, 0
      %p138 = por %p136, %p137
      %p139 = scmp.ne.s32.totalorder %s131, %s133
      %p140 = scmp.eq.s32.totalorder %s36, 1
      %p141 = por %p139, %p140
      %p142 = scmp.ne.s32.totalorder %s133, %s134
      %p143 = scmp.eq.s32.totalorder %s36, 0
      %p144 = por %p142, %p143
      %p145 = scmp.ne.s32.totalorder %s133, %s134
      %p146 = scmp.eq.s32.totalorder %s37, 1
      %p147 = por %p145, %p146
      %p149 = scmp.ne.s32.totalorder %s134, %s148
      %p150 = scmp.eq.s32.totalorder %s37, 0
      %p151 = por %p149, %p150
      %s153 = sadd.s32 %s152, 1
      %p156 = scmp.eq.s32.totalorder %s31, 1
      %p157 = scmp.ne.s32.totalorder %s152, %s154
      %p158 = scmp.eq.s32.totalorder %s31, 0
      %p159 = por %p157, %p158
      %p160 = scmp.ne.s32.totalorder %s152, %s154
      %p161 = scmp.eq.s32.totalorder %s36, 1
      %p162 = por %p160, %p161
      %p163 = scmp.ne.s32.totalorder %s154, %s155
      %p164 = scmp.eq.s32.totalorder %s36, 0
      %p165 = por %p163, %p164
      %p166 = scmp.ne.s32.totalorder %s154, %s155
      %p167 = scmp.eq.s32.totalorder %s37, 1
      %p168 = por %p166, %p167
      %p170 = scmp.ne.s32.totalorder %s155, %s169
      %p171 = scmp.eq.s32.totalorder %s37, 0
      %p172 = por %p170, %p171
      %s174 = sadd.s32 %s173, 1
      %p177 = scmp.eq.s32.totalorder %s31, 1
      %p178 = scmp.ne.s32.totalorder %s173, %s175
      %p179 = scmp.eq.s32.totalorder %s31, 0
      %p180 = por %p178, %p179
      %p181 = scmp.ne.s32.totalorder %s173, %s175
      %p182 = scmp.eq.s32.totalorder %s36, 1
      %p183 = por %p181, %p182
      %p184 = scmp.ne.s32.totalorder %s175, %s176
      %p185 = scmp.eq.s32.totalorder %s36, 0
      %p186 = por %p184, %p185
      %p187 = scmp.ne.s32.totalorder %s175, %s176
      %p188 = scmp.eq.s32.totalorder %s37, 1
      %p189 = por %p187, %p188
      %p191 = scmp.ne.s32.totalorder %s176, %s190
      %p192 = scmp.eq.s32.totalorder %s37, 0
      %p193 = por %p191, %p192
      %s195 = sadd.s32 %s194, 1
      %p198 = scmp.eq.s32.totalorder %s31, 1
      %p199 = scmp.ne.s32.totalorder %s194, %s196
      %p200 = scmp.eq.s32.totalorder %s31, 0
      %p201 = por %p199, %p200
      %p202 = scmp.ne.s32.totalorder %s194, %s196
      %p203 = scmp.eq.s32.totalorder %s36, 1
      %p204 = por %p202, %p203
      %p205 = scmp.ne.s32.totalorder %s196, %s197
      %p206 = scmp.eq.s32.totalorder %s36, 0
      %p207 = por %p205, %p206
      %p208 = scmp.ne.s32.totalorder %s196, %s197
      %p209 = scmp.eq.s32.totalorder %s37, 1
      %p210 = por %p208, %p209
      %p212 = scmp.ne.s32.totalorder %s197, %s211
      %p213 = scmp.eq.s32.totalorder %s37, 0
      %p214 = por %p212, %p213
      %s216 = sadd.s32 %s215, 1
      %p219 = scmp.eq.s32.totalorder %s31, 1
      %p220 = scmp.ne.s32.totalorder %s215, %s217
      %p221 = scmp.eq.s32.totalorder %s31, 0
      %p222 = por %p220, %p221
      %p223 = scmp.ne.s32.totalorder %s215, %s217
      %p224 = scmp.eq.s32.totalorder %s36, 1
      %p225 = por %p223, %p224
      %p226 = scmp.ne.s32.totalorder %s217, %s218
      %p227 = scmp.eq.s32.totalorder %s36, 0
      %p228 = por %p226, %p227
      %p229 = scmp.ne.s32.totalorder %s217, %s218
      %p230 = scmp.eq.s32.totalorder %s37, 1
      %p231 = por %p229, %p230
      %p233 = scmp.ne.s32.totalorder %s218, %s232
      %p234 = scmp.eq.s32.totalorder %s37, 0
      %p235 = por %p233, %p234
      %s237 = sadd.s32 %s236, 1
      %p240 = scmp.eq.s32.totalorder %s31, 1
      %p241 = scmp.ne.s32.totalorder %s236, %s238
      %p242 = scmp.eq.s32.totalorder %s31, 0
      %p243 = por %p241, %p242
      %p244 = scmp.ne.s32.totalorder %s236, %s238
      %p245 = scmp.eq.s32.totalorder %s36, 1
      %p246 = por %p244, %p245
      %p247 = scmp.ne.s32.totalorder %s238, %s239
      %p248 = scmp.eq.s32.totalorder %s36, 0
      %p249 = por %p247, %p248
      %p250 = scmp.ne.s32.totalorder %s238, %s239
      %p251 = scmp.eq.s32.totalorder %s37, 1
      %p252 = por %p250, %p251
      %p254 = scmp.ne.s32.totalorder %s239, %s253
      %p255 = scmp.eq.s32.totalorder %s37, 0
      %p256 = por %p254, %p255
      %s257 = ssub.s32 %s38, %s50
      %s258 = ssub.s32 %s39, %s46
      %s259 = sor.u32 %s257, %s258
      %p260 = scmp.eq.s32.totalorder %s259, 0
      %s262 = sadd.s32 %s261, 1
      %s263 = scalar_select %p260, %s261, %s262
      %p266 = pneg %p260
      %p267 = scmp.eq.s32.totalorder %s31, 1
      %p268 = por %p266, %p267
      %p269 = scmp.ne.s32.totalorder %s261, %s264
      %p270 = scmp.eq.s32.totalorder %s31, 0
      %p271 = por %p269, %p270
      %p272 = scmp.ne.s32.totalorder %s261, %s264
      %p273 = scmp.eq.s32.totalorder %s36, 1
      %p274 = por %p272, %p273
      %p275 = scmp.ne.s32.totalorder %s264, %s265
      %p276 = scmp.eq.s32.totalorder %s36, 0
      %p277 = por %p275, %p276
      %p278 = scmp.ne.s32.totalorder %s264, %s265
      %p279 = scmp.eq.s32.totalorder %s37, 1
      %p280 = por %p278, %p279
      %p282 = scmp.ne.s32.totalorder %s265, %s281
      %p283 = scmp.eq.s32.totalorder %s37, 0
      %p284 = por %p282, %p283
      %s285 = ssub.s32 %s38, %s50
      %s286 = ssub.s32 %s39, %s46
      %s287 = sor.u32 %s285, %s286
      %p288 = scmp.eq.s32.totalorder %s287, 0
      %s290 = sadd.s32 %s289, 1
      %s291 = scalar_select %p288, %s289, %s290
      %p294 = pneg %p288
      %p295 = scmp.eq.s32.totalorder %s31, 1
      %p296 = por %p294, %p295
      %p297 = scmp.ne.s32.totalorder %s289, %s292
      %p298 = scmp.eq.s32.totalorder %s31, 0
      %p299 = por %p297, %p298
      %p300 = scmp.ne.s32.totalorder %s289, %s292
      %p301 = scmp.eq.s32.totalorder %s36, 1
      %p302 = por %p300, %p301
      %p303 = scmp.ne.s32.totalorder %s292, %s293
      %p304 = scmp.eq.s32.totalorder %s36, 0
      %p305 = por %p303, %p304
      %p306 = scmp.ne.s32.totalorder %s292, %s293
      %p307 = scmp.eq.s32.totalorder %s37, 1
      %p308 = por %p306, %p307
      %p310 = scmp.ne.s32.totalorder %s293, %s309
      %p311 = scmp.eq.s32.totalorder %s37, 0
      %p312 = por %p310, %p311
      %p313 = scmp.le.s32.totalorder 1, %s31
      %p314 = scmp.lt.s32.totalorder %s31, 3
      %p315 = pnand %p313, %p314
      %p316 = pneg %p315
      // Predicated region
      $region9: #{tpu_custom_call.1} parent=5 // pred_check
        _
      $region10: #{tpu_custom_call.1} parent=5 // pred_check_branch
        %318 = sbr.rel (%p315) target = $region12
      $region11: #{tpu_custom_call.1} parent=5 // pred_region
        %s319 = ssub.s32 %s31, 1
        // Predicated region
        $region13: #{tpu_custom_call.1} parent=11 // pred_check
          %p320 = pneg %p144
        $region14: #{tpu_custom_call.1} parent=11 // pred_check_branch
          %322 = sbr.rel (%p320) target = $region16
        $region15: #{tpu_custom_call.1} parent=11 // pred_region
          %s324 = ssub.s32 512, 512
          %325 = vsyncadd [#allocation10], %s324
          %s326 = sshll.u32 [#allocation9], 4
          %s327 = int_to_ptr.vmem [resolvable:$true] %s326
          %332 = dma.hbm_to_vmem [thread:$0]  %s3, 512, %s327, [#allocation10], 128, 128, 8
        $region16: #{tpu_custom_call.1} parent=11 // pred_fallthru
          _
        // Predicated region
        $region17: #{tpu_custom_call.1} parent=11 // pred_check
          %p333 = pneg %p165
        $region18: #{tpu_custom_call.1} parent=11 // pred_check_branch
          %335 = sbr.rel (%p333) target = $region20
        $region19: #{tpu_custom_call.1} parent=11 // pred_region
          %s337 = ssub.s32 512, 512
          %338 = vsyncadd [#allocation10], %s337
          %s339 = sshll.u32 [#allocation11], 4
          %s340 = int_to_ptr.vmem [resolvable:$true] %s339
          %345 = dma.hbm_to_vmem [thread:$0]  %s4, 512, %s340, [#allocation10], 128, 128, 8
        $region20: #{tpu_custom_call.1} parent=11 // pred_fallthru
          _
        // Predicated region
        $region21: #{tpu_custom_call.1} parent=11 // pred_check
          %p346 = pneg %p186
        $region22: #{tpu_custom_call.1} parent=11 // pred_check_branch
          %348 = sbr.rel (%p346) target = $region24
        $region23: #{tpu_custom_call.1} parent=11 // pred_region
          %s350 = ssub.s32 512, 512
          %351 = vsyncadd [#allocation13], %s350
          %s352 = sshll.u32 [#allocation12], 4
          %s353 = int_to_ptr.vmem [resolvable:$true] %s352
          %358 = dma.hbm_to_vmem [thread:$0]  %s5, 512, %s353, [#allocation13], 128, 128, 8
        $region24: #{tpu_custom_call.1} parent=11 // pred_fallthru
          _
        // Predicated region
        $region25: #{tpu_custom_call.1} parent=11 // pred_check
          %p359 = pneg %p207
        $region26: #{tpu_custom_call.1} parent=11 // pred_check_branch
          %361 = sbr.rel (%p359) target = $region28
        $region27: #{tpu_custom_call.1} parent=11 // pred_region
          %s363 = ssub.s32 512, 512
          %364 = vsyncadd [#allocation13], %s363
          %s365 = sshll.u32 [#allocation14], 4
          %s366 = int_to_ptr.vmem [resolvable:$true] %s365
          %371 = dma.hbm_to_vmem [thread:$0]  %s6, 512, %s366, [#allocation13], 128, 128, 8
        $region28: #{tpu_custom_call.1} parent=11 // pred_fallthru
          _
        // Predicated region
        $region29: #{tpu_custom_call.1} parent=11 // pred_check
          %p372 = pneg %p228
        $region30: #{tpu_custom_call.1} parent=11 // pred_check_branch
          %374 = sbr.rel (%p372) target = $region32
        $region31: #{tpu_custom_call.1} parent=11 // pred_region
          _
        $region32: #{tpu_custom_call.1} parent=11 // pred_fallthru
          _
        // Predicated region
        $region33: #{tpu_custom_call.1} parent=11 // pred_check
          %p375 = pneg %p249
        $region34: #{tpu_custom_call.1} parent=11 // pred_check_branch
          %377 = sbr.rel (%p375) target = $region36
        $region35: #{tpu_custom_call.1} parent=11 // pred_region
          _
        $region36: #{tpu_custom_call.1} parent=11 // pred_fallthru
          _
      $region12: #{tpu_custom_call.1} parent=5 // pred_fallthru
        _
      %p378 = scmp.lt.s32.totalorder %s31, 2
      // Predicated region
      $region37: #{tpu_custom_call.1} parent=5 // pred_check
        %p379 = pneg %p378
      $region38: #{tpu_custom_call.1} parent=5 // pred_check_branch
        %381 = sbr.rel (%p379) target = $region40
      $region39: #{tpu_custom_call.1} parent=5 // pred_region
        // Predicated region
        $region41: #{tpu_custom_call.1} parent=39 // pred_check
          %p382 = pneg %p65
        $region42: #{tpu_custom_call.1} parent=39 // pred_check_branch
          %384 = sbr.rel (%p382) target = $region44
        $region43: #{tpu_custom_call.1} parent=39 // pred_region
          %s385 = sand.u32 %s55, 1
          %s386 = scalar_lea.sflag [#allocation4], %s385
          %s387 = sand.u32 %s55, 1
          %s388 = smul.addr %s387, 8
          %s389 = scalar_lea.vmem [#allocation3], %s388
          %s391 = ssub.s32 128, 128
          %392 = vsyncadd %s386, %s391
          %s393 = sadd.s32 %s39, %s38
          %s394 = smul.addr %s393, 128
          %s395 = scalar_lea.hbm %s0, %s394
          %s397 = sshll.u32 %s389, 4
          %s398 = int_to_ptr.vmem [resolvable:$true] %s397
          %400 = dma.hbm_to_vmem [thread:$0]  %s395, 128, %s398, %s386
        $region44: #{tpu_custom_call.1} parent=39 // pred_fallthru
          _
        // Predicated region
        $region45: #{tpu_custom_call.1} parent=39 // pred_check
          %p401 = pneg %p91
        $region46: #{tpu_custom_call.1} parent=39 // pred_check_branch
          %403 = sbr.rel (%p401) target = $region48
        $region47: #{tpu_custom_call.1} parent=39 // pred_region
          %s404 = sand.u32 %s31, 1
          %s405 = scalar_lea.sflag [#allocation7], %s404
          %s406 = sand.u32 %s81, 1
          %s407 = smul.addr %s406, 8
          %s408 = scalar_lea.vmem [#allocation6], %s407
          %s410 = ssub.s32 128, 128
          %411 = vsyncadd %s405, %s410
          %s412 = smul.addr %s38, 128
          %s413 = scalar_lea.hbm %s1, %s412
          %s415 = sshll.u32 %s408, 4
          %s416 = int_to_ptr.vmem [resolvable:$true] %s415
          %418 = dma.hbm_to_vmem [thread:$0]  %s413, 128, %s416, %s405
        $region48: #{tpu_custom_call.1} parent=39 // pred_fallthru
          _
        // Predicated region
        $region49: #{tpu_custom_call.1} parent=39 // pred_check
          %p419 = pneg %p117
        $region50: #{tpu_custom_call.1} parent=39 // pred_check_branch
          %421 = sbr.rel (%p419) target = $region52
        $region51: #{tpu_custom_call.1} parent=39 // pred_region
          %s422 = sand.u32 %s31, 1
          %s423 = scalar_lea.sflag [#allocation7], %s422
          %s424 = sand.u32 %s107, 1
          %s425 = smul.addr %s424, 8
          %s426 = scalar_lea.vmem [#allocation8], %s425
          %s428 = ssub.s32 128, 128
          %429 = vsyncadd %s423, %s428
          %s430 = smul.addr %s38, 128
          %s431 = scalar_lea.hbm %s2, %s430
          %s433 = sshll.u32 %s426, 4
          %s434 = int_to_ptr.vmem [resolvable:$true] %s433
          %436 = dma.hbm_to_vmem [thread:$0]  %s431, 128, %s434, %s423
        $region52: #{tpu_custom_call.1} parent=39 // pred_fallthru
          _
      $region40: #{tpu_custom_call.1} parent=5 // pred_fallthru
        _
      %p437 = scmp.le.s32.totalorder 1, %s31
      %p438 = scmp.lt.s32.totalorder %s31, 3
      %p439 = pnand %p437, %p438
      %p440 = pneg %p439
      // Predicated region
      $region53: #{tpu_custom_call.1} parent=5 // pred_check
        _
      $region54: #{tpu_custom_call.1} parent=5 // pred_check_branch
        %442 = sbr.rel (%p439) target = $region56
      $region55: #{tpu_custom_call.1} parent=5 // pred_region
        %s443 = ssub.s32 %s31, 1
        %s444 = sand.u32 %s58, 1
        %s445 = scalar_lea.sflag [#allocation4], %s444
        %s446 = sand.u32 %s58, 1
        %s447 = smul.addr %s446, 8
        %s448 = scalar_lea.vmem [#allocation3], %s447
        // Predicated region
        $region57: #{tpu_custom_call.1} parent=55 // pred_check
          %p449 = pneg %p71
        $region58: #{tpu_custom_call.1} parent=55 // pred_check_branch
          %451 = sbr.rel (%p449) target = $region60
        $region59: #{tpu_custom_call.1} parent=55 // pred_region
          %452 = dma.done %s445, 128
        $region60: #{tpu_custom_call.1} parent=55 // pred_fallthru
          _
        %s453 = sand.u32 %s36, 1
        %s454 = scalar_lea.sflag [#allocation7], %s453
        %s455 = sand.u32 %s84, 1
        %s456 = smul.addr %s455, 8
        %s457 = scalar_lea.vmem [#allocation6], %s456
        // Predicated region
        $region61: #{tpu_custom_call.1} parent=55 // pred_check
          %p458 = pneg %p97
        $region62: #{tpu_custom_call.1} parent=55 // pred_check_branch
          %460 = sbr.rel (%p458) target = $region64
        $region63: #{tpu_custom_call.1} parent=55 // pred_region
          %461 = dma.done %s454, 128
        $region64: #{tpu_custom_call.1} parent=55 // pred_fallthru
          _
        %s462 = sand.u32 %s36, 1
        %s463 = scalar_lea.sflag [#allocation7], %s462
        %s464 = sand.u32 %s110, 1
        %s465 = smul.addr %s464, 8
        %s466 = scalar_lea.vmem [#allocation8], %s465
        // Predicated region
        $region65: #{tpu_custom_call.1} parent=55 // pred_check
          %p467 = pneg %p123
        $region66: #{tpu_custom_call.1} parent=55 // pred_check_branch
          %469 = sbr.rel (%p467) target = $region68
        $region67: #{tpu_custom_call.1} parent=55 // pred_region
          %470 = dma.done %s463, 128
        $region68: #{tpu_custom_call.1} parent=55 // pred_fallthru
          _
        // Predicated region
        $region69: #{tpu_custom_call.1} parent=55 // pred_check
          %p471 = pneg %p144
        $region70: #{tpu_custom_call.1} parent=55 // pred_check_branch
          %473 = sbr.rel (%p471) target = $region72
        $region71: #{tpu_custom_call.1} parent=55 // pred_region
          %474 = dma.done [#allocation10], 512
        $region72: #{tpu_custom_call.1} parent=55 // pred_fallthru
          _
        // Predicated region
        $region73: #{tpu_custom_call.1} parent=55 // pred_check
          %p475 = pneg %p165
        $region74: #{tpu_custom_call.1} parent=55 // pred_check_branch
          %477 = sbr.rel (%p475) target = $region76
        $region75: #{tpu_custom_call.1} parent=55 // pred_region
          %478 = dma.done [#allocation10], 512
        $region76: #{tpu_custom_call.1} parent=55 // pred_fallthru
          _
        // Predicated region
        $region77: #{tpu_custom_call.1} parent=55 // pred_check
          %p479 = pneg %p186
        $region78: #{tpu_custom_call.1} parent=55 // pred_check_branch
          %481 = sbr.rel (%p479) target = $region80
        $region79: #{tpu_custom_call.1} parent=55 // pred_region
          %482 = dma.done [#allocation13], 512
        $region80: #{tpu_custom_call.1} parent=55 // pred_fallthru
          _
        // Predicated region
        $region81: #{tpu_custom_call.1} parent=55 // pred_check
          %p483 = pneg %p207
        $region82: #{tpu_custom_call.1} parent=55 // pred_check_branch
          %485 = sbr.rel (%p483) target = $region84
        $region83: #{tpu_custom_call.1} parent=55 // pred_region
          %486 = dma.done [#allocation13], 512
        $region84: #{tpu_custom_call.1} parent=55 // pred_fallthru
          _
        %s487 = sand.u32 %s58, 1
        %s488 = scalar_lea.sflag [#allocation4], %s487
        %s489 = sand.u32 %s58, 1
        %s490 = smul.addr %s489, 8
        %s491 = scalar_lea.vmem [#allocation3], %s490
        %p492 = pneg %p71
        %p493 = pneg %p68
        %s494 = sand.u32 %s36, 1
        %s495 = scalar_lea.sflag [#allocation7], %s494
        %s496 = sand.u32 %s84, 1
        %s497 = smul.addr %s496, 8
        %s498 = scalar_lea.vmem [#allocation6], %s497
        %p499 = pneg %p97
        %p500 = pneg %p94
        %s501 = sand.u32 %s36, 1
        %s502 = scalar_lea.sflag [#allocation7], %s501
        %s503 = sand.u32 %s110, 1
        %s504 = smul.addr %s503, 8
        %s505 = scalar_lea.vmem [#allocation8], %s504
        %p506 = pneg %p123
        %p507 = pneg %p120
        %p508 = pneg %p144
        %p509 = pneg %p141
        %p510 = pneg %p165
        %p511 = pneg %p162
        %p512 = pneg %p186
        %p513 = pneg %p183
        %p514 = pneg %p207
        %p515 = pneg %p204
        %p516 = pneg %p228
        %p517 = pneg %p225
        %p518 = pneg %p249
        %p519 = pneg %p246
        %p520 = pneg %p277
        %p521 = pneg %p274
        %s522 = sand.u32 %s264, 1
        %s523 = scalar_lea.sflag [#allocation5], %s522
        %s524 = sand.u32 %s264, 1
        %s525 = smul.addr %s524, 8
        %s526 = scalar_lea.vmem [#allocation15], %s525
        %p527 = pneg %p305
        %p528 = pneg %p302
        %s529 = sand.u32 %s292, 1
        %s530 = scalar_lea.sflag [#allocation17], %s529
        %s531 = sand.u32 %s292, 1
        %s532 = smul.addr %s531, 32
        %s533 = scalar_lea.vmem [#allocation16], %s532
        %v534 = vld [vmem:[%s448] sm:$0xff]
        %v535 = vld [vmem:[%s457] sm:$0xff]
        %v536 = vld [vmem:[%s466] sm:$0xff]
        %v537 = vld [vmem:[#allocation9] sm:$0xff]
        %v538 = vld [vmem:[#allocation9 + $0x8] sm:$0xff]
        %v539 = vld [vmem:[#allocation9 + $0x10] sm:$0xff]
        %v540 = vld [vmem:[#allocation9 + $0x18] sm:$0xff]
        %vm541 = vcmask 261120
        %v543 = vsel %vm541, %v537, 0
        %v546 = vsel %vm541, %v538, 0
        %v549 = vsel %vm541, %v539, 0
        %v552 = vsel %vm541, %v540, 0
        %v555 = vsel %vm541, %v534, 0
        %557 = vmatprep.subr.mxu0 0.0
        %558 = vmatpush1.xpose.msra.mxu0 %v555
        %559 = vmatprep.subr.mxu0 0.0
        %560 = vmatpush1.xpose.msra.mxu0 0.0
        %561 = vmatprep.subr.mxu0 0.0
        %562 = vmatpush1.xpose.msra.mxu0 0.0
        %563 = vmatprep.subr.mxu0 0.0
        %564 = vmatpush1.xpose.msra.mxu0 0.0
        %565 = vmatprep.subr.mxu0 0.0
        %566 = vmatpush1.xpose.msra.mxu0 0.0
        %567 = vmatprep.subr.mxu0 0.0
        %568 = vmatpush1.xpose.msra.mxu0 0.0
        %569 = vmatprep.subr.mxu0 0.0
        %570 = vmatpush1.xpose.msra.mxu0 0.0
        %571 = vmatprep.subr.mxu0 0.0
        %572 = vmatpush1.xpose.msra.mxu0 0.0
        %573 = vmatprep.subr.mxu0 0.0
        %574 = vmatpush1.xpose.msra.mxu0 0.0
        %575 = vmatprep.subr.mxu0 0.0
        %576 = vmatpush1.xpose.msra.mxu0 0.0
        %577 = vmatprep.subr.mxu0 0.0
        %578 = vmatpush1.xpose.msra.mxu0 0.0
        %579 = vmatprep.subr.mxu0 0.0
        %580 = vmatpush1.xpose.msra.mxu0 0.0
        %581 = vmatprep.subr.mxu0 0.0
        %582 = vmatpush1.xpose.msra.mxu0 0.0
        %583 = vmatprep.subr.mxu0 0.0
        %584 = vmatpush1.xpose.msra.mxu0 0.0
        %585 = vmatprep.subr.mxu0 0.0
        %586 = vmatpush1.xpose.msra.mxu0 0.0
        %587 = vmatprep.subr.mxu0 0.0
        %588 = vmatpush1.xpose.msra.mxu0 0.0
        %589 = vmatprep.subr.mxu0 0.0
        %590 = vmatpush1.xpose.msra.mxu0 0.0
        %591 = vmatprep.subr.mxu0 0.0
        %592 = vmatpush1.xpose.msra.mxu0 0.0
        %593 = vmatprep.subr.mxu0 0.0
        %594 = vmatpush1.xpose.msra.mxu0 0.0
        %595 = vmatprep.subr.mxu0 0.0
        %596 = vmatpush1.xpose.msra.mxu0 0.0
        %597 = vmatprep.subr.mxu0 0.0
        %598 = vmatpush1.xpose.msra.mxu0 0.0
        %599 = vmatprep.subr.mxu0 0.0
        %600 = vmatpush1.xpose.msra.mxu0 0.0
        %601 = vmatprep.subr.mxu0 0.0
        %602 = vmatpush1.xpose.msra.mxu0 0.0
        %603 = vmatprep.subr.mxu0 0.0
        %604 = vmatpush1.xpose.msra.mxu0 0.0
        %605 = vmatprep.subr.mxu0 0.0
        %606 = vmatpush1.xpose.msra.mxu0 0.0
        %607 = vmatprep.subr.mxu0 0.0
        %608 = vmatpush1.xpose.msra.mxu0 0.0
        %609 = vmatprep.subr.mxu0 0.0
        %610 = vmatpush1.xpose.msra.mxu0 0.0
        %611 = vmatprep.subr.mxu0 0.0
        %612 = vmatpush1.xpose.msra.mxu0 0.0
        %613 = vmatprep.subr.mxu0 0.0
        %614 = vmatpush1.xpose.msra.mxu0 0.0
        %615 = vmatprep.subr.mxu0 0.0
        %616 = vmatpush1.xpose.msra.mxu0 0.0
        %617 = vmatprep.subr.mxu0 0.0
        %618 = vmatpush1.xpose.msra.mxu0 0.0
        %619 = vmatprep.subr.mxu0 0.0
        %620 = vmatpush1.xpose.msra.mxu0 0.0
        %621 = vmatprep.mubr.f32.mxu0 0.0
        %622 = vmatmul.mubr.f32.gmra.mrb[0].mxu0 %v543
        %v623 = vpop.f32.mrb[0].mxu0
        %v624 = vadd.f32 0.0, %v623
        %v625 = vpop.f32.mrb[0].mxu0
        %626 = vmatprep.mubr.f32.mxu0 0.0
        %627 = vmatmul.mubr.f32.gmra.mrb[0].mxu0 %v546
        %v628 = vpop.f32.mrb[0].mxu0
        %v629 = vadd.f32 0.0, %v628
        %v630 = vpop.f32.mrb[0].mxu0
        %631 = vmatprep.mubr.f32.mxu0 0.0
        %632 = vmatmul.mubr.f32.gmra.mrb[0].mxu0 %v549
        %v633 = vpop.f32.mrb[0].mxu0
        %v634 = vadd.f32 0.0, %v633
        %v635 = vpop.f32.mrb[0].mxu0
        %636 = vmatprep.mubr.f32.mxu0 0.0
        %637 = vmatmul.mubr.f32.gmra.mrb[0].mxu0 %v552
        %v638 = vpop.f32.mrb[0].mxu0
        %v639 = vadd.f32 0.0, %v638
        %v640 = vpop.f32.mrb[0].mxu0
        %641 = vdwg.mxu0
        %v642 = vld [vmem:[#allocation11] sm:$0xff]
        %v643 = vld [vmem:[#allocation11 + $0x8] sm:$0xff]
        %v644 = vld [vmem:[#allocation11 + $0x10] sm:$0xff]
        %v645 = vld [vmem:[#allocation11 + $0x18] sm:$0xff]
        %v647 = vsel %vm541, %v642, 0
        %v650 = vsel %vm541, %v643, 0
        %v653 = vsel %vm541, %v644, 0
        %v656 = vsel %vm541, %v645, 0
        %v659 = vsel %vm541, %v535, 0
        %661 = vmatprep.subr.mxu0 0.0
        %662 = vmatpush1.xpose.msra.mxu0 %v659
        %663 = vmatprep.subr.mxu0 0.0
        %664 = vmatpush1.xpose.msra.mxu0 0.0
        %665 = vmatprep.subr.mxu0 0.0
        %666 = vmatpush1.xpose.msra.mxu0 0.0
        %667 = vmatprep.subr.mxu0 0.0
        %668 = vmatpush1.xpose.msra.mxu0 0.0
        %669 = vmatprep.subr.mxu0 0.0
        %670 = vmatpush1.xpose.msra.mxu0 0.0
        %671 = vmatprep.subr.mxu0 0.0
        %672 = vmatpush1.xpose.msra.mxu0 0.0
        %673 = vmatprep.subr.mxu0 0.0
        %674 = vmatpush1.xpose.msra.mxu0 0.0
        %675 = vmatprep.subr.mxu0 0.0
        %676 = vmatpush1.xpose.msra.mxu0 0.0
        %677 = vmatprep.subr.mxu0 0.0
        %678 = vmatpush1.xpose.msra.mxu0 0.0
        %679 = vmatprep.subr.mxu0 0.0
        %680 = vmatpush1.xpose.msra.mxu0 0.0
        %681 = vmatprep.subr.mxu0 0.0
        %682 = vmatpush1.xpose.msra.mxu0 0.0
        %683 = vmatprep.subr.mxu0 0.0
        %684 = vmatpush1.xpose.msra.mxu0 0.0
        %685 = vmatprep.subr.mxu0 0.0
        %686 = vmatpush1.xpose.msra.mxu0 0.0
        %687 = vmatprep.subr.mxu0 0.0
        %688 = vmatpush1.xpose.msra.mxu0 0.0
        %689 = vmatprep.subr.mxu0 0.0
        %690 = vmatpush1.xpose.msra.mxu0 0.0
        %691 = vmatprep.subr.mxu0 0.0
        %692 = vmatpush1.xpose.msra.mxu0 0.0
        %693 = vmatprep.subr.mxu0 0.0
        %694 = vmatpush1.xpose.msra.mxu0 0.0
        %695 = vmatprep.subr.mxu0 0.0
        %696 = vmatpush1.xpose.msra.mxu0 0.0
        %697 = vmatprep.subr.mxu0 0.0
        %698 = vmatpush1.xpose.msra.mxu0 0.0
        %699 = vmatprep.subr.mxu0 0.0
        %700 = vmatpush1.xpose.msra.mxu0 0.0
        %701 = vmatprep.subr.mxu0 0.0
        %702 = vmatpush1.xpose.msra.mxu0 0.0
        %703 = vmatprep.subr.mxu0 0.0
        %704 = vmatpush1.xpose.msra.mxu0 0.0
        %705 = vmatprep.subr.mxu0 0.0
        %706 = vmatpush1.xpose.msra.mxu0 0.0
        %707 = vmatprep.subr.mxu0 0.0
        %708 = vmatpush1.xpose.msra.mxu0 0.0
        %709 = vmatprep.subr.mxu0 0.0
        %710 = vmatpush1.xpose.msra.mxu0 0.0
        %711 = vmatprep.subr.mxu0 0.0
        %712 = vmatpush1.xpose.msra.mxu0 0.0
        %713 = vmatprep.subr.mxu0 0.0
        %714 = vmatpush1.xpose.msra.mxu0 0.0
        %715 = vmatprep.subr.mxu0 0.0
        %716 = vmatpush1.xpose.msra.mxu0 0.0
        %717 = vmatprep.subr.mxu0 0.0
        %718 = vmatpush1.xpose.msra.mxu0 0.0
        %719 = vmatprep.subr.mxu0 0.0
        %720 = vmatpush1.xpose.msra.mxu0 0.0
        %721 = vmatprep.subr.mxu0 0.0
        %722 = vmatpush1.xpose.msra.mxu0 0.0
        %723 = vmatprep.subr.mxu0 0.0
        %724 = vmatpush1.xpose.msra.mxu0 0.0
        %725 = vmatprep.mubr.f32.mxu0 0.0
        %726 = vmatmul.mubr.f32.gmra.mrb[0].mxu0 %v647
        %v727 = vpop.f32.mrb[0].mxu0
        %v728 = vadd.f32 0.0, %v727
        %v729 = vpop.f32.mrb[0].mxu0
        %730 = vmatprep.mubr.f32.mxu0 0.0
        %731 = vmatmul.mubr.f32.gmra.mrb[0].mxu0 %v650
        %v732 = vpop.f32.mrb[0].mxu0
        %v733 = vadd.f32 0.0, %v732
        %v734 = vpop.f32.mrb[0].mxu0
        %735 = vmatprep.mubr.f32.mxu0 0.0
        %736 = vmatmul.mubr.f32.gmra.mrb[0].mxu0 %v653
        %v737 = vpop.f32.mrb[0].mxu0
        %v738 = vadd.f32 0.0, %v737
        %v739 = vpop.f32.mrb[0].mxu0
        %740 = vmatprep.mubr.f32.mxu0 0.0
        %741 = vmatmul.mubr.f32.gmra.mrb[0].mxu0 %v656
        %v742 = vpop.f32.mrb[0].mxu0
        %v743 = vadd.f32 0.0, %v742
        %v744 = vpop.f32.mrb[0].mxu0
        %745 = vdwg.mxu0
        %v746 = vld [vmem:[#allocation12] sm:$0xff]
        %v747 = vld [vmem:[#allocation12 + $0x8] sm:$0xff]
        %v748 = vld [vmem:[#allocation12 + $0x10] sm:$0xff]
        %v749 = vld [vmem:[#allocation12 + $0x18] sm:$0xff]
        %v751 = vsel %vm541, %v746, 0
        %v754 = vsel %vm541, %v747, 0
        %v757 = vsel %vm541, %v748, 0
        %v760 = vsel %vm541, %v749, 0
        %v763 = vsel %vm541, %v536, 0
        %765 = vmatprep.subr.mxu0 0.0
        %766 = vmatpush1.xpose.msra.mxu0 %v763
        %767 = vmatprep.subr.mxu0 0.0
        %768 = vmatpush1.xpose.msra.mxu0 0.0
        %769 = vmatprep.subr.mxu0 0.0
        %770 = vmatpush1.xpose.msra.mxu0 0.0
        %771 = vmatprep.subr.mxu0 0.0
        %772 = vmatpush1.xpose.msra.mxu0 0.0
        %773 = vmatprep.subr.mxu0 0.0
        %774 = vmatpush1.xpose.msra.mxu0 0.0
        %775 = vmatprep.subr.mxu0 0.0
        %776 = vmatpush1.xpose.msra.mxu0 0.0
        %777 = vmatprep.subr.mxu0 0.0
        %778 = vmatpush1.xpose.msra.mxu0 0.0
        %779 = vmatprep.subr.mxu0 0.0
        %780 = vmatpush1.xpose.msra.mxu0 0.0
        %781 = vmatprep.subr.mxu0 0.0
        %782 = vmatpush1.xpose.msra.mxu0 0.0
        %783 = vmatprep.subr.mxu0 0.0
        %784 = vmatpush1.xpose.msra.mxu0 0.0
        %785 = vmatprep.subr.mxu0 0.0
        %786 = vmatpush1.xpose.msra.mxu0 0.0
        %787 = vmatprep.subr.mxu0 0.0
        %788 = vmatpush1.xpose.msra.mxu0 0.0
        %789 = vmatprep.subr.mxu0 0.0
        %790 = vmatpush1.xpose.msra.mxu0 0.0
        %791 = vmatprep.subr.mxu0 0.0
        %792 = vmatpush1.xpose.msra.mxu0 0.0
        %793 = vmatprep.subr.mxu0 0.0
        %794 = vmatpush1.xpose.msra.mxu0 0.0
        %795 = vmatprep.subr.mxu0 0.0
        %796 = vmatpush1.xpose.msra.mxu0 0.0
        %797 = vmatprep.subr.mxu0 0.0
        %798 = vmatpush1.xpose.msra.mxu0 0.0
        %799 = vmatprep.subr.mxu0 0.0
        %800 = vmatpush1.xpose.msra.mxu0 0.0
        %801 = vmatprep.subr.mxu0 0.0
        %802 = vmatpush1.xpose.msra.mxu0 0.0
        %803 = vmatprep.subr.mxu0 0.0
        %804 = vmatpush1.xpose.msra.mxu0 0.0
        %805 = vmatprep.subr.mxu0 0.0
        %806 = vmatpush1.xpose.msra.mxu0 0.0
        %807 = vmatprep.subr.mxu0 0.0
        %808 = vmatpush1.xpose.msra.mxu0 0.0
        %809 = vmatprep.subr.mxu0 0.0
        %810 = vmatpush1.xpose.msra.mxu0 0.0
        %811 = vmatprep.subr.mxu0 0.0
        %812 = vmatpush1.xpose.msra.mxu0 0.0
        %813 = vmatprep.subr.mxu0 0.0
        %814 = vmatpush1.xpose.msra.mxu0 0.0
        %815 = vmatprep.subr.mxu0 0.0
        %816 = vmatpush1.xpose.msra.mxu0 0.0
        %817 = vmatprep.subr.mxu0 0.0
        %818 = vmatpush1.xpose.msra.mxu0 0.0
        %819 = vmatprep.subr.mxu0 0.0
        %820 = vmatpush1.xpose.msra.mxu0 0.0
        %821 = vmatprep.subr.mxu0 0.0
        %822 = vmatpush1.xpose.msra.mxu0 0.0
        %823 = vmatprep.subr.mxu0 0.0
        %824 = vmatpush1.xpose.msra.mxu0 0.0
        %825 = vmatprep.subr.mxu0 0.0
        %826 = vmatpush1.xpose.msra.mxu0 0.0
        %827 = vmatprep.subr.mxu0 0.0
        %828 = vmatpush1.xpose.msra.mxu0 0.0
        %829 = vmatprep.mubr.f32.mxu0 0.0
        %830 = vmatmul.mubr.f32.gmra.mrb[0].mxu0 %v751
        %v831 = vpop.f32.mrb[0].mxu0
        %v832 = vadd.f32 0.0, %v831
        %v833 = vpop.f32.mrb[0].mxu0
        %834 = vmatprep.mubr.f32.mxu0 0.0
        %835 = vmatmul.mubr.f32.gmra.mrb[0].mxu0 %v754
        %v836 = vpop.f32.mrb[0].mxu0
        %v837 = vadd.f32 0.0, %v836
        %v838 = vpop.f32.mrb[0].mxu0
        %839 = vmatprep.mubr.f32.mxu0 0.0
        %840 = vmatmul.mubr.f32.gmra.mrb[0].mxu0 %v757
        %v841 = vpop.f32.mrb[0].mxu0
        %v842 = vadd.f32 0.0, %v841
        %v843 = vpop.f32.mrb[0].mxu0
        %844 = vmatprep.mubr.f32.mxu0 0.0
        %845 = vmatmul.mubr.f32.gmra.mrb[0].mxu0 %v760
        %v846 = vpop.f32.mrb[0].mxu0
        %v847 = vadd.f32 0.0, %v846
        %v848 = vpop.f32.mrb[0].mxu0
        %849 = vdwg.mxu0
        %v850 = vmul.f32 %v624, 0.35355338
        %v851 = vmul.f32 %v629, 0.35355338
        %v852 = vmul.f32 %v634, 0.35355338
        %v853 = vmul.f32 %v639, 0.35355338
        %854 = vxpose.xlu0.b32.start [1/16] %v850, 128
        %855 = vxpose.xlu0.b32.cont [2/16] 0.0, 128
        %856 = vxpose.xlu0.b32.cont [3/16] 0.0, 128
        %857 = vxpose.xlu0.b32.cont [4/16] 0.0, 128
        %858 = vxpose.xlu0.b32.cont [5/16] 0.0, 128
        %859 = vxpose.xlu0.b32.cont [6/16] 0.0, 128
        %860 = vxpose.xlu0.b32.cont [7/16] 0.0, 128
        %861 = vxpose.xlu0.b32.cont [8/16] 0.0, 128
        %862 = vxpose.xlu0.b32.cont [9/16] 0.0, 128
        %863 = vxpose.xlu0.b32.cont [10/16] 0.0, 128
        %864 = vxpose.xlu0.b32.cont [11/16] 0.0, 128
        %865 = vxpose.xlu0.b32.cont [12/16] 0.0, 128
        %866 = vxpose.xlu0.b32.cont [13/16] 0.0, 128
        %867 = vxpose.xlu0.b32.cont [14/16] 0.0, 128
        %868 = vxpose.xlu0.b32.cont [15/16] 0.0, 128
        %869 = vxpose.xlu0.b32.end [16/16] 0.0, 128
        %v870 = vpop.trf.xlu0
        %v871 = vpop.trf.xlu0
        %v872 = vpop.trf.xlu0
        %v873 = vpop.trf.xlu0
        %v874 = vpop.trf.xlu0
        %v875 = vpop.trf.xlu0
        %v876 = vpop.trf.xlu0
        %v877 = vpop.trf.xlu0
        %v878 = vpop.trf.xlu0
        %v879 = vpop.trf.xlu0
        %v880 = vpop.trf.xlu0
        %v881 = vpop.trf.xlu0
        %v882 = vpop.trf.xlu0
        %v883 = vpop.trf.xlu0
        %v884 = vpop.trf.xlu0
        %v885 = vpop.trf.xlu0
        %886 = vxpose.xlu0.b32.start [1/16] %v851, 128
        %887 = vxpose.xlu0.b32.cont [2/16] 0.0, 128
        %888 = vxpose.xlu0.b32.cont [3/16] 0.0, 128
        %889 = vxpose.xlu0.b32.cont [4/16] 0.0, 128
        %890 = vxpose.xlu0.b32.cont [5/16] 0.0, 128
        %891 = vxpose.xlu0.b32.cont [6/16] 0.0, 128
        %892 = vxpose.xlu0.b32.cont [7/16] 0.0, 128
        %893 = vxpose.xlu0.b32.cont [8/16] 0.0, 128
        %894 = vxpose.xlu0.b32.cont [9/16] 0.0, 128
        %895 = vxpose.xlu0.b32.cont [10/16] 0.0, 128
        %896 = vxpose.xlu0.b32.cont [11/16] 0.0, 128
        %897 = vxpose.xlu0.b32.cont [12/16] 0.0, 128
        %898 = vxpose.xlu0.b32.cont [13/16] 0.0, 128
        %899 = vxpose.xlu0.b32.cont [14/16] 0.0, 128
        %900 = vxpose.xlu0.b32.cont [15/16] 0.0, 128
        %901 = vxpose.xlu0.b32.end [16/16] 0.0, 128
        %v902 = vpop.trf.xlu0
        %v903 = vpop.trf.xlu0
        %v904 = vpop.trf.xlu0
        %v905 = vpop.trf.xlu0
        %v906 = vpop.trf.xlu0
        %v907 = vpop.trf.xlu0
        %v908 = vpop.trf.xlu0
        %v909 = vpop.trf.xlu0
        %v910 = vpop.trf.xlu0
        %v911 = vpop.trf.xlu0
        %v912 = vpop.trf.xlu0
        %v913 = vpop.trf.xlu0
        %v914 = vpop.trf.xlu0
        %v915 = vpop.trf.xlu0
        %v916 = vpop.trf.xlu0
        %v917 = vpop.trf.xlu0
        %918 = vxpose.xlu0.b32.start [1/16] %v852, 128
        %919 = vxpose.xlu0.b32.cont [2/16] 0.0, 128
        %920 = vxpose.xlu0.b32.cont [3/16] 0.0, 128
        %921 = vxpose.xlu0.b32.cont [4/16] 0.0, 128
        %922 = vxpose.xlu0.b32.cont [5/16] 0.0, 128
        %923 = vxpose.xlu0.b32.cont [6/16] 0.0, 128
        %924 = vxpose.xlu0.b32.cont [7/16] 0.0, 128
        %925 = vxpose.xlu0.b32.cont [8/16] 0.0, 128
        %926 = vxpose.xlu0.b32.cont [9/16] 0.0, 128
        %927 = vxpose.xlu0.b32.cont [10/16] 0.0, 128
        %928 = vxpose.xlu0.b32.cont [11/16] 0.0, 128
        %929 = vxpose.xlu0.b32.cont [12/16] 0.0, 128
        %930 = vxpose.xlu0.b32.cont [13/16] 0.0, 128
        %931 = vxpose.xlu0.b32.cont [14/16] 0.0, 128
        %932 = vxpose.xlu0.b32.cont [15/16] 0.0, 128
        %933 = vxpose.xlu0.b32.end [16/16] 0.0, 128
        %v934 = vpop.trf.xlu0
        %v935 = vpop.trf.xlu0
        %v936 = vpop.trf.xlu0
        %v937 = vpop.trf.xlu0
        %v938 = vpop.trf.xlu0
        %v939 = vpop.trf.xlu0
        %v940 = vpop.trf.xlu0
        %v941 = vpop.trf.xlu0
        %v942 = vpop.trf.xlu0
        %v943 = vpop.trf.xlu0
        %v944 = vpop.trf.xlu0
        %v945 = vpop.trf.xlu0
        %v946 = vpop.trf.xlu0
        %v947 = vpop.trf.xlu0
        %v948 = vpop.trf.xlu0
        %v949 = vpop.trf.xlu0
        %950 = vxpose.xlu0.b32.start [1/16] %v853, 128
        %951 = vxpose.xlu0.b32.cont [2/16] 0.0, 128
        %952 = vxpose.xlu0.b32.cont [3/16] 0.0, 128
        %953 = vxpose.xlu0.b32.cont [4/16] 0.0, 128
        %954 = vxpose.xlu0.b32.cont [5/16] 0.0, 128
        %955 = vxpose.xlu0.b32.cont [6/16] 0.0, 128
        %956 = vxpose.xlu0.b32.cont [7/16] 0.0, 128
        %957 = vxpose.xlu0.b32.cont [8/16] 0.0, 128
        %958 = vxpose.xlu0.b32.cont [9/16] 0.0, 128
        %959 = vxpose.xlu0.b32.cont [10/16] 0.0, 128
        %960 = vxpose.xlu0.b32.cont [11/16] 0.0, 128
        %961 = vxpose.xlu0.b32.cont [12/16] 0.0, 128
        %962 = vxpose.xlu0.b32.cont [13/16] 0.0, 128
        %963 = vxpose.xlu0.b32.cont [14/16] 0.0, 128
        %964 = vxpose.xlu0.b32.cont [15/16] 0.0, 128
        %965 = vxpose.xlu0.b32.end [16/16] 0.0, 128
        %v966 = vpop.trf.xlu0
        %v967 = vpop.trf.xlu0
        %v968 = vpop.trf.xlu0
        %v969 = vpop.trf.xlu0
        %v970 = vpop.trf.xlu0
        %v971 = vpop.trf.xlu0
        %v972 = vpop.trf.xlu0
        %v973 = vpop.trf.xlu0
        %v974 = vpop.trf.xlu0
        %v975 = vpop.trf.xlu0
        %v976 = vpop.trf.xlu0
        %v977 = vpop.trf.xlu0
        %v978 = vpop.trf.xlu0
        %v979 = vpop.trf.xlu0
        %v980 = vpop.trf.xlu0
        %v981 = vpop.trf.xlu0
        %vm982 = vcmask 64512
        %v984 = vsel %vm982, %v870, 0
        %986 = vmatprep.subr.mxu0 0.0
        %987 = vmatpush1.msra.mxu0 %v728
        %988 = vmatprep.subr.mxu0 0.0
        %989 = vmatpush1.msra.mxu0 0.0
        %990 = vmatprep.subr.mxu0 0.0
        %991 = vmatpush1.msra.mxu0 0.0
        %992 = vmatprep.subr.mxu0 0.0
        %993 = vmatpush1.msra.mxu0 0.0
        %994 = vmatprep.subr.mxu0 0.0
        %995 = vmatpush1.msra.mxu0 0.0
        %996 = vmatprep.subr.mxu0 0.0
        %997 = vmatpush1.msra.mxu0 0.0
        %998 = vmatprep.subr.mxu0 0.0
        %999 = vmatpush1.msra.mxu0 0.0
        %1000 = vmatprep.subr.mxu0 0.0
        %1001 = vmatpush1.msra.mxu0 0.0
        %1002 = vmatprep.subr.mxu0 0.0
        %1003 = vmatpush1.msra.mxu0 0.0
        %1004 = vmatprep.subr.mxu0 0.0
        %1005 = vmatpush1.msra.mxu0 0.0
        %1006 = vmatprep.subr.mxu0 0.0
        %1007 = vmatpush1.msra.mxu0 0.0
        %1008 = vmatprep.subr.mxu0 0.0
        %1009 = vmatpush1.msra.mxu0 0.0
        %1010 = vmatprep.subr.mxu0 0.0
        %1011 = vmatpush1.msra.mxu0 0.0
        %1012 = vmatprep.subr.mxu0 0.0
        %1013 = vmatpush1.msra.mxu0 0.0
        %1014 = vmatprep.subr.mxu0 0.0
        %1015 = vmatpush1.msra.mxu0 0.0
        %1016 = vmatprep.subr.mxu0 0.0
        %1017 = vmatpush1.msra.mxu0 0.0
        %1018 = vmatprep.subr.mxu0 0.0
        %1019 = vmatpush1.msra.mxu0 0.0
        %1020 = vmatprep.subr.mxu0 0.0
        %1021 = vmatpush1.msra.mxu0 0.0
        %1022 = vmatprep.subr.mxu0 0.0
        %1023 = vmatpush1.msra.mxu0 0.0
        %1024 = vmatprep.subr.mxu0 0.0
        %1025 = vmatpush1.msra.mxu0 0.0
        %1026 = vmatprep.subr.mxu0 0.0
        %1027 = vmatpush1.msra.mxu0 0.0
        %1028 = vmatprep.subr.mxu0 0.0
        %1029 = vmatpush1.msra.mxu0 0.0
        %1030 = vmatprep.subr.mxu0 0.0
        %1031 = vmatpush1.msra.mxu0 0.0
        %1032 = vmatprep.subr.mxu0 0.0
        %1033 = vmatpush1.msra.mxu0 0.0
        %1034 = vmatprep.subr.mxu0 0.0
        %1035 = vmatpush1.msra.mxu0 0.0
        %1036 = vmatprep.subr.mxu0 0.0
        %1037 = vmatpush1.msra.mxu0 0.0
        %1038 = vmatprep.subr.mxu0 0.0
        %1039 = vmatpush1.msra.mxu0 0.0
        %1040 = vmatprep.subr.mxu0 0.0
        %1041 = vmatpush1.msra.mxu0 0.0
        %1042 = vmatprep.subr.mxu0 0.0
        %1043 = vmatpush1.msra.mxu0 0.0
        %1044 = vmatprep.subr.mxu0 0.0
        %1045 = vmatpush1.msra.mxu0 0.0
        %1046 = vmatprep.subr.mxu0 0.0
        %1047 = vmatpush1.msra.mxu0 0.0
        %1048 = vmatprep.subr.mxu0 0.0
        %1049 = vmatpush1.msra.mxu0 0.0
        %1050 = vmatprep.mubr.f32.mxu0 0.0
        %1051 = vmatmul.mubr.f32.gmra.mrb[0].mxu0 %v984
        %v1052 = vpop.f32.mrb[0].mxu0
        %v1053 = vadd.f32 0.0, %v1052
        %v1054 = vpop.f32.mrb[0].mxu0
        %1055 = vdwg.mxu0
        %v1057 = vsel %vm982, %v902, 0
        %1059 = vmatprep.subr.mxu0 0.0
        %1060 = vmatpush1.msra.mxu0 %v733
        %1061 = vmatprep.subr.mxu0 0.0
        %1062 = vmatpush1.msra.mxu0 0.0
        %1063 = vmatprep.subr.mxu0 0.0
        %1064 = vmatpush1.msra.mxu0 0.0
        %1065 = vmatprep.subr.mxu0 0.0
        %1066 = vmatpush1.msra.mxu0 0.0
        %1067 = vmatprep.subr.mxu0 0.0
        %1068 = vmatpush1.msra.mxu0 0.0
        %1069 = vmatprep.subr.mxu0 0.0
        %1070 = vmatpush1.msra.mxu0 0.0
        %1071 = vmatprep.subr.mxu0 0.0
        %1072 = vmatpush1.msra.mxu0 0.0
        %1073 = vmatprep.subr.mxu0 0.0
        %1074 = vmatpush1.msra.mxu0 0.0
        %1075 = vmatprep.subr.mxu0 0.0
        %1076 = vmatpush1.msra.mxu0 0.0
        %1077 = vmatprep.subr.mxu0 0.0
        %1078 = vmatpush1.msra.mxu0 0.0
        %1079 = vmatprep.subr.mxu0 0.0
        %1080 = vmatpush1.msra.mxu0 0.0
        %1081 = vmatprep.subr.mxu0 0.0
        %1082 = vmatpush1.msra.mxu0 0.0
        %1083 = vmatprep.subr.mxu0 0.0
        %1084 = vmatpush1.msra.mxu0 0.0
        %1085 = vmatprep.subr.mxu0 0.0
        %1086 = vmatpush1.msra.mxu0 0.0
        %1087 = vmatprep.subr.mxu0 0.0
        %1088 = vmatpush1.msra.mxu0 0.0
        %1089 = vmatprep.subr.mxu0 0.0
        %1090 = vmatpush1.msra.mxu0 0.0
        %1091 = vmatprep.subr.mxu0 0.0
        %1092 = vmatpush1.msra.mxu0 0.0
        %1093 = vmatprep.subr.mxu0 0.0
        %1094 = vmatpush1.msra.mxu0 0.0
        %1095 = vmatprep.subr.mxu0 0.0
        %1096 = vmatpush1.msra.mxu0 0.0
        %1097 = vmatprep.subr.mxu0 0.0
        %1098 = vmatpush1.msra.mxu0 0.0
        %1099 = vmatprep.subr.mxu0 0.0
        %1100 = vmatpush1.msra.mxu0 0.0
        %1101 = vmatprep.subr.mxu0 0.0
        %1102 = vmatpush1.msra.mxu0 0.0
        %1103 = vmatprep.subr.mxu0 0.0
        %1104 = vmatpush1.msra.mxu0 0.0
        %1105 = vmatprep.subr.mxu0 0.0
        %1106 = vmatpush1.msra.mxu0 0.0
        %1107 = vmatprep.subr.mxu0 0.0
        %1108 = vmatpush1.msra.mxu0 0.0
        %1109 = vmatprep.subr.mxu0 0.0
        %1110 = vmatpush1.msra.mxu0 0.0
        %1111 = vmatprep.subr.mxu0 0.0
        %1112 = vmatpush1.msra.mxu0 0.0
        %1113 = vmatprep.subr.mxu0 0.0
        %1114 = vmatpush1.msra.mxu0 0.0
        %1115 = vmatprep.subr.mxu0 0.0
        %1116 = vmatpush1.msra.mxu0 0.0
        %1117 = vmatprep.subr.mxu0 0.0
        %1118 = vmatpush1.msra.mxu0 0.0
        %1119 = vmatprep.subr.mxu0 0.0
        %1120 = vmatpush1.msra.mxu0 0.0
        %1121 = vmatprep.subr.mxu0 0.0
        %1122 = vmatpush1.msra.mxu0 0.0
        %1123 = vmatprep.mubr.f32.mxu0 0.0
        %1124 = vmatmul.mubr.f32.gmra.mrb[0].mxu0 %v1057
        %v1125 = vpop.f32.mrb[0].mxu0
        %v1126 = vadd.f32 0.0, %v1125
        %v1127 = vpop.f32.mrb[0].mxu0
        %1128 = vdwg.mxu0
        %v1130 = vsel %vm982, %v934, 0
        %1132 = vmatprep.subr.mxu0 0.0
        %1133 = vmatpush1.msra.mxu0 %v738
        %1134 = vmatprep.subr.mxu0 0.0
        %1135 = vmatpush1.msra.mxu0 0.0
        %1136 = vmatprep.subr.mxu0 0.0
        %1137 = vmatpush1.msra.mxu0 0.0
        %1138 = vmatprep.subr.mxu0 0.0
        %1139 = vmatpush1.msra.mxu0 0.0
        %1140 = vmatprep.subr.mxu0 0.0
        %1141 = vmatpush1.msra.mxu0 0.0
        %1142 = vmatprep.subr.mxu0 0.0
        %1143 = vmatpush1.msra.mxu0 0.0
        %1144 = vmatprep.subr.mxu0 0.0
        %1145 = vmatpush1.msra.mxu0 0.0
        %1146 = vmatprep.subr.mxu0 0.0
        %1147 = vmatpush1.msra.mxu0 0.0
        %1148 = vmatprep.subr.mxu0 0.0
        %1149 = vmatpush1.msra.mxu0 0.0
        %1150 = vmatprep.subr.mxu0 0.0
        %1151 = vmatpush1.msra.mxu0 0.0
        %1152 = vmatprep.subr.mxu0 0.0
        %1153 = vmatpush1.msra.mxu0 0.0
        %1154 = vmatprep.subr.mxu0 0.0
        %1155 = vmatpush1.msra.mxu0 0.0
        %1156 = vmatprep.subr.mxu0 0.0
        %1157 = vmatpush1.msra.mxu0 0.0
        %1158 = vmatprep.subr.mxu0 0.0
        %1159 = vmatpush1.msra.mxu0 0.0
        %1160 = vmatprep.subr.mxu0 0.0
        %1161 = vmatpush1.msra.mxu0 0.0
        %1162 = vmatprep.subr.mxu0 0.0
        %1163 = vmatpush1.msra.mxu0 0.0
        %1164 = vmatprep.subr.mxu0 0.0
        %1165 = vmatpush1.msra.mxu0 0.0
        %1166 = vmatprep.subr.mxu0 0.0
        %1167 = vmatpush1.msra.mxu0 0.0
        %1168 = vmatprep.subr.mxu0 0.0
        %1169 = vmatpush1.msra.mxu0 0.0
        %1170 = vmatprep.subr.mxu0 0.0
        %1171 = vmatpush1.msra.mxu0 0.0
        %1172 = vmatprep.subr.mxu0 0.0
        %1173 = vmatpush1.msra.mxu0 0.0
        %1174 = vmatprep.subr.mxu0 0.0
        %1175 = vmatpush1.msra.mxu0 0.0
        %1176 = vmatprep.subr.mxu0 0.0
        %1177 = vmatpush1.msra.mxu0 0.0
        %1178 = vmatprep.subr.mxu0 0.0
        %1179 = vmatpush1.msra.mxu0 0.0
        %1180 = vmatprep.subr.mxu0 0.0
        %1181 = vmatpush1.msra.mxu0 0.0
        %1182 = vmatprep.subr.mxu0 0.0
        %1183 = vmatpush1.msra.mxu0 0.0
        %1184 = vmatprep.subr.mxu0 0.0
        %1185 = vmatpush1.msra.mxu0 0.0
        %1186 = vmatprep.subr.mxu0 0.0
        %1187 = vmatpush1.msra.mxu0 0.0
        %1188 = vmatprep.subr.mxu0 0.0
        %1189 = vmatpush1.msra.mxu0 0.0
        %1190 = vmatprep.subr.mxu0 0.0
        %1191 = vmatpush1.msra.mxu0 0.0
        %1192 = vmatprep.subr.mxu0 0.0
        %1193 = vmatpush1.msra.mxu0 0.0
        %1194 = vmatprep.subr.mxu0 0.0
        %1195 = vmatpush1.msra.mxu0 0.0
        %1196 = vmatprep.mubr.f32.mxu0 0.0
        %1197 = vmatmul.mubr.f32.gmra.mrb[0].mxu0 %v1130
        %v1198 = vpop.f32.mrb[0].mxu0
        %v1199 = vadd.f32 0.0, %v1198
        %v1200 = vpop.f32.mrb[0].mxu0
        %1201 = vdwg.mxu0
        %v1203 = vsel %vm982, %v966, 0
        %1205 = vmatprep.subr.mxu0 0.0
        %1206 = vmatpush1.msra.mxu0 %v743
        %1207 = vmatprep.subr.mxu0 0.0
        %1208 = vmatpush1.msra.mxu0 0.0
        %1209 = vmatprep.subr.mxu0 0.0
        %1210 = vmatpush1.msra.mxu0 0.0
        %1211 = vmatprep.subr.mxu0 0.0
        %1212 = vmatpush1.msra.mxu0 0.0
        %1213 = vmatprep.subr.mxu0 0.0
        %1214 = vmatpush1.msra.mxu0 0.0
        %1215 = vmatprep.subr.mxu0 0.0
        %1216 = vmatpush1.msra.mxu0 0.0
        %1217 = vmatprep.subr.mxu0 0.0
        %1218 = vmatpush1.msra.mxu0 0.0
        %1219 = vmatprep.subr.mxu0 0.0
        %1220 = vmatpush1.msra.mxu0 0.0
        %1221 = vmatprep.subr.mxu0 0.0
        %1222 = vmatpush1.msra.mxu0 0.0
        %1223 = vmatprep.subr.mxu0 0.0
        %1224 = vmatpush1.msra.mxu0 0.0
        %1225 = vmatprep.subr.mxu0 0.0
        %1226 = vmatpush1.msra.mxu0 0.0
        %1227 = vmatprep.subr.mxu0 0.0
        %1228 = vmatpush1.msra.mxu0 0.0
        %1229 = vmatprep.subr.mxu0 0.0
        %1230 = vmatpush1.msra.mxu0 0.0
        %1231 = vmatprep.subr.mxu0 0.0
        %1232 = vmatpush1.msra.mxu0 0.0
        %1233 = vmatprep.subr.mxu0 0.0
        %1234 = vmatpush1.msra.mxu0 0.0
        %1235 = vmatprep.subr.mxu0 0.0
        %1236 = vmatpush1.msra.mxu0 0.0
        %1237 = vmatprep.subr.mxu0 0.0
        %1238 = vmatpush1.msra.mxu0 0.0
        %1239 = vmatprep.subr.mxu0 0.0
        %1240 = vmatpush1.msra.mxu0 0.0
        %1241 = vmatprep.subr.mxu0 0.0
        %1242 = vmatpush1.msra.mxu0 0.0
        %1243 = vmatprep.subr.mxu0 0.0
        %1244 = vmatpush1.msra.mxu0 0.0
        %1245 = vmatprep.subr.mxu0 0.0
        %1246 = vmatpush1.msra.mxu0 0.0
        %1247 = vmatprep.subr.mxu0 0.0
        %1248 = vmatpush1.msra.mxu0 0.0
        %1249 = vmatprep.subr.mxu0 0.0
        %1250 = vmatpush1.msra.mxu0 0.0
        %1251 = vmatprep.subr.mxu0 0.0
        %1252 = vmatpush1.msra.mxu0 0.0
        %1253 = vmatprep.subr.mxu0 0.0
        %1254 = vmatpush1.msra.mxu0 0.0
        %1255 = vmatprep.subr.mxu0 0.0
        %1256 = vmatpush1.msra.mxu0 0.0
        %1257 = vmatprep.subr.mxu0 0.0
        %1258 = vmatpush1.msra.mxu0 0.0
        %1259 = vmatprep.subr.mxu0 0.0
        %1260 = vmatpush1.msra.mxu0 0.0
        %1261 = vmatprep.subr.mxu0 0.0
        %1262 = vmatpush1.msra.mxu0 0.0
        %1263 = vmatprep.subr.mxu0 0.0
        %1264 = vmatpush1.msra.mxu0 0.0
        %1265 = vmatprep.subr.mxu0 0.0
        %1266 = vmatpush1.msra.mxu0 0.0
        %1267 = vmatprep.subr.mxu0 0.0
        %1268 = vmatpush1.msra.mxu0 0.0
        %1269 = vmatprep.mubr.f32.mxu0 0.0
        %1270 = vmatmul.mubr.f32.gmra.mrb[0].mxu0 %v1203
        %v1271 = vpop.f32.mrb[0].mxu0
        %v1272 = vadd.f32 0.0, %v1271
        %v1273 = vpop.f32.mrb[0].mxu0
        %1274 = vdwg.mxu0
        %v1275 = vsel %vm982, %v1053, -inf
        %1276 = vmax.xlane.f32.xlu0 %v1275
        %v1277 = vpop.xlane.xlu0 %1276
        %v1278 = vsel %vm982, %v1126, -inf
        %1279 = vmax.xlane.f32.xlu0 %v1278
        %v1280 = vpop.xlane.xlu0 %1279
        %v1281 = vsel %vm982, %v1199, -inf
        %1282 = vmax.xlane.f32.xlu0 %v1281
        %v1283 = vpop.xlane.xlu0 %1282
        %v1284 = vsel %vm982, %v1272, -inf
        %1285 = vmax.xlane.f32.xlu0 %v1284
        %v1286 = vpop.xlane.xlu0 %1285
        %v1287 = vsub.f32 %v1053, %v1277
        %v1288 = vsub.f32 %v1126, %v1280
        %v1289 = vsub.f32 %v1199, %v1283
        %v1290 = vsub.f32 %v1272, %v1286
        %v1291 = vmul.f32 %v1287, 1.442695
        %v1292 = vpow.pop %v1291
        %v1293 = vmul.f32 %v1288, 1.442695
        %v1294 = vpow.pop %v1293
        %v1295 = vmul.f32 %v1289, 1.442695
        %v1296 = vpow.pop %v1295
        %v1297 = vmul.f32 %v1290, 1.442695
        %v1298 = vpow.pop %v1297
        %v1299 = vsel %vm982, %v1292, 0.0
        %1300 = vadd.xlane.f32.xlu0 %v1299
        %v1301 = vpop.xlane.xlu0 %1300
        %v1302 = vsel %vm982, %v1294, 0.0
        %1303 = vadd.xlane.f32.xlu0 %v1302
        %v1304 = vpop.xlane.xlu0 %1303
        %v1305 = vsel %vm982, %v1296, 0.0
        %1306 = vadd.xlane.f32.xlu0 %v1305
        %v1307 = vpop.xlane.xlu0 %1306
        %v1308 = vsel %vm982, %v1298, 0.0
        %1309 = vadd.xlane.f32.xlu0 %v1308
        %v1310 = vpop.xlane.xlu0 %1309
        %v1311 = vrcp.pop %v1301
        %v1312 = vrcp.pop %v1304
        %v1313 = vrcp.pop %v1307
        %v1314 = vrcp.pop %v1310
        %v1315 = vmul.f32 %v1292, %v1311
        %v1316 = vmul.f32 %v1294, %v1312
        %v1317 = vmul.f32 %v1296, %v1313
        %v1318 = vmul.f32 %v1298, %v1314
        %1319 = vst.msk [vmem:[%s533] sm:$0xff] %vm982, %v1315
        %1320 = vst.msk [vmem:[%s533 + $0x8] sm:$0xff] %vm982, %v1316
        %1321 = vst.msk [vmem:[%s533 + $0x10] sm:$0xff] %vm982, %v1317
        %1322 = vst.msk [vmem:[%s533 + $0x18] sm:$0xff] %vm982, %v1318
        %v1324 = vsel %vm982, %v1315, 0
        %v1327 = vsel %vm982, %v832, 0
        %1329 = vmatprep.subr.mxu0 0.0
        %1330 = vmatpush1.xpose.msra.mxu0 %v1327
        %1331 = vmatprep.subr.mxu0 0.0
        %1332 = vmatpush1.xpose.msra.mxu0 0.0
        %1333 = vmatprep.subr.mxu0 0.0
        %1334 = vmatpush1.xpose.msra.mxu0 0.0
        %1335 = vmatprep.subr.mxu0 0.0
        %1336 = vmatpush1.xpose.msra.mxu0 0.0
        %1337 = vmatprep.subr.mxu0 0.0
        %1338 = vmatpush1.xpose.msra.mxu0 0.0
        %1339 = vmatprep.subr.mxu0 0.0
        %1340 = vmatpush1.xpose.msra.mxu0 0.0
        %1341 = vmatprep.subr.mxu0 0.0
        %1342 = vmatpush1.xpose.msra.mxu0 0.0
        %1343 = vmatprep.subr.mxu0 0.0
        %1344 = vmatpush1.xpose.msra.mxu0 0.0
        %1345 = vmatprep.subr.mxu0 0.0
        %1346 = vmatpush1.xpose.msra.mxu0 0.0
        %1347 = vmatprep.subr.mxu0 0.0
        %1348 = vmatpush1.xpose.msra.mxu0 0.0
        %1349 = vmatprep.subr.mxu0 0.0
        %1350 = vmatpush1.xpose.msra.mxu0 0.0
        %1351 = vmatprep.subr.mxu0 0.0
        %1352 = vmatpush1.xpose.msra.mxu0 0.0
        %1353 = vmatprep.subr.mxu0 0.0
        %1354 = vmatpush1.xpose.msra.mxu0 0.0
        %1355 = vmatprep.subr.mxu0 0.0
        %1356 = vmatpush1.xpose.msra.mxu0 0.0
        %1357 = vmatprep.subr.mxu0 0.0
        %1358 = vmatpush1.xpose.msra.mxu0 0.0
        %1359 = vmatprep.subr.mxu0 0.0
        %1360 = vmatpush1.xpose.msra.mxu0 0.0
        %1361 = vmatprep.subr.mxu0 0.0
        %1362 = vmatpush1.xpose.msra.mxu0 0.0
        %1363 = vmatprep.subr.mxu0 0.0
        %1364 = vmatpush1.xpose.msra.mxu0 0.0
        %1365 = vmatprep.subr.mxu0 0.0
        %1366 = vmatpush1.xpose.msra.mxu0 0.0
        %1367 = vmatprep.subr.mxu0 0.0
        %1368 = vmatpush1.xpose.msra.mxu0 0.0
        %1369 = vmatprep.subr.mxu0 0.0
        %1370 = vmatpush1.xpose.msra.mxu0 0.0
        %1371 = vmatprep.subr.mxu0 0.0
        %1372 = vmatpush1.xpose.msra.mxu0 0.0
        %1373 = vmatprep.subr.mxu0 0.0
        %1374 = vmatpush1.xpose.msra.mxu0 0.0
        %1375 = vmatprep.subr.mxu0 0.0
        %1376 = vmatpush1.xpose.msra.mxu0 0.0
        %1377 = vmatprep.subr.mxu0 0.0
        %1378 = vmatpush1.xpose.msra.mxu0 0.0
        %1379 = vmatprep.subr.mxu0 0.0
        %1380 = vmatpush1.xpose.msra.mxu0 0.0
        %1381 = vmatprep.subr.mxu0 0.0
        %1382 = vmatpush1.xpose.msra.mxu0 0.0
        %1383 = vmatprep.subr.mxu0 0.0
        %1384 = vmatpush1.xpose.msra.mxu0 0.0
        %1385 = vmatprep.subr.mxu0 0.0
        %1386 = vmatpush1.xpose.msra.mxu0 0.0
        %1387 = vmatprep.subr.mxu0 0.0
        %1388 = vmatpush1.xpose.msra.mxu0 0.0
        %1389 = vmatprep.subr.mxu0 0.0
        %1390 = vmatpush1.xpose.msra.mxu0 0.0
        %1391 = vmatprep.subr.mxu0 0.0
        %1392 = vmatpush1.xpose.msra.mxu0 0.0
        %1393 = vmatprep.mubr.f32.mxu0 0.0
        %1394 = vmatmul.mubr.f32.gmra.mrb[0].mxu0 %v1324
        %v1395 = vpop.f32.mrb[0].mxu0
        %v1396 = vadd.f32 0.0, %v1395
        %v1397 = vpop.f32.mrb[0].mxu0
        %1398 = vdwg.mxu0
        %v1400 = vsel %vm982, %v1316, 0
        %v1403 = vsel %vm982, %v837, 0
        %1405 = vmatprep.subr.mxu0 0.0
        %1406 = vmatpush1.xpose.msra.mxu0 %v1403
        %1407 = vmatprep.subr.mxu0 0.0
        %1408 = vmatpush1.xpose.msra.mxu0 0.0
        %1409 = vmatprep.subr.mxu0 0.0
        %1410 = vmatpush1.xpose.msra.mxu0 0.0
        %1411 = vmatprep.subr.mxu0 0.0
        %1412 = vmatpush1.xpose.msra.mxu0 0.0
        %1413 = vmatprep.subr.mxu0 0.0
        %1414 = vmatpush1.xpose.msra.mxu0 0.0
        %1415 = vmatprep.subr.mxu0 0.0
        %1416 = vmatpush1.xpose.msra.mxu0 0.0
        %1417 = vmatprep.subr.mxu0 0.0
        %1418 = vmatpush1.xpose.msra.mxu0 0.0
        %1419 = vmatprep.subr.mxu0 0.0
        %1420 = vmatpush1.xpose.msra.mxu0 0.0
        %1421 = vmatprep.subr.mxu0 0.0
        %1422 = vmatpush1.xpose.msra.mxu0 0.0
        %1423 = vmatprep.subr.mxu0 0.0
        %1424 = vmatpush1.xpose.msra.mxu0 0.0
        %1425 = vmatprep.subr.mxu0 0.0
        %1426 = vmatpush1.xpose.msra.mxu0 0.0
        %1427 = vmatprep.subr.mxu0 0.0
        %1428 = vmatpush1.xpose.msra.mxu0 0.0
        %1429 = vmatprep.subr.mxu0 0.0
        %1430 = vmatpush1.xpose.msra.mxu0 0.0
        %1431 = vmatprep.subr.mxu0 0.0
        %1432 = vmatpush1.xpose.msra.mxu0 0.0
        %1433 = vmatprep.subr.mxu0 0.0
        %1434 = vmatpush1.xpose.msra.mxu0 0.0
        %1435 = vmatprep.subr.mxu0 0.0
        %1436 = vmatpush1.xpose.msra.mxu0 0.0
        %1437 = vmatprep.subr.mxu0 0.0
        %1438 = vmatpush1.xpose.msra.mxu0 0.0
        %1439 = vmatprep.subr.mxu0 0.0
        %1440 = vmatpush1.xpose.msra.mxu0 0.0
        %1441 = vmatprep.subr.mxu0 0.0
        %1442 = vmatpush1.xpose.msra.mxu0 0.0
        %1443 = vmatprep.subr.mxu0 0.0
        %1444 = vmatpush1.xpose.msra.mxu0 0.0
        %1445 = vmatprep.subr.mxu0 0.0
        %1446 = vmatpush1.xpose.msra.mxu0 0.0
        %1447 = vmatprep.subr.mxu0 0.0
        %1448 = vmatpush1.xpose.msra.mxu0 0.0
        %1449 = vmatprep.subr.mxu0 0.0
        %1450 = vmatpush1.xpose.msra.mxu0 0.0
        %1451 = vmatprep.subr.mxu0 0.0
        %1452 = vmatpush1.xpose.msra.mxu0 0.0
        %1453 = vmatprep.subr.mxu0 0.0
        %1454 = vmatpush1.xpose.msra.mxu0 0.0
        %1455 = vmatprep.subr.mxu0 0.0
        %1456 = vmatpush1.xpose.msra.mxu0 0.0
        %1457 = vmatprep.subr.mxu0 0.0
        %1458 = vmatpush1.xpose.msra.mxu0 0.0
        %1459 = vmatprep.subr.mxu0 0.0
        %1460 = vmatpush1.xpose.msra.mxu0 0.0
        %1461 = vmatprep.subr.mxu0 0.0
        %1462 = vmatpush1.xpose.msra.mxu0 0.0
        %1463 = vmatprep.subr.mxu0 0.0
        %1464 = vmatpush1.xpose.msra.mxu0 0.0
        %1465 = vmatprep.subr.mxu0 0.0
        %1466 = vmatpush1.xpose.msra.mxu0 0.0
        %1467 = vmatprep.subr.mxu0 0.0
        %1468 = vmatpush1.xpose.msra.mxu0 0.0
        %1469 = vmatprep.mubr.f32.mxu0 0.0
        %1470 = vmatmul.mubr.f32.gmra.mrb[0].mxu0 %v1400
        %v1471 = vpop.f32.mrb[0].mxu0
        %v1472 = vadd.f32 0.0, %v1471
        %v1473 = vpop.f32.mrb[0].mxu0
        %1474 = vdwg.mxu0
        %v1476 = vsel %vm982, %v1317, 0
        %v1479 = vsel %vm982, %v842, 0
        %1481 = vmatprep.subr.mxu0 0.0
        %1482 = vmatpush1.xpose.msra.mxu0 %v1479
        %1483 = vmatprep.subr.mxu0 0.0
        %1484 = vmatpush1.xpose.msra.mxu0 0.0
        %1485 = vmatprep.subr.mxu0 0.0
        %1486 = vmatpush1.xpose.msra.mxu0 0.0
        %1487 = vmatprep.subr.mxu0 0.0
        %1488 = vmatpush1.xpose.msra.mxu0 0.0
        %1489 = vmatprep.subr.mxu0 0.0
        %1490 = vmatpush1.xpose.msra.mxu0 0.0
        %1491 = vmatprep.subr.mxu0 0.0
        %1492 = vmatpush1.xpose.msra.mxu0 0.0
        %1493 = vmatprep.subr.mxu0 0.0
        %1494 = vmatpush1.xpose.msra.mxu0 0.0
        %1495 = vmatprep.subr.mxu0 0.0
        %1496 = vmatpush1.xpose.msra.mxu0 0.0
        %1497 = vmatprep.subr.mxu0 0.0
        %1498 = vmatpush1.xpose.msra.mxu0 0.0
        %1499 = vmatprep.subr.mxu0 0.0
        %1500 = vmatpush1.xpose.msra.mxu0 0.0
        %1501 = vmatprep.subr.mxu0 0.0
        %1502 = vmatpush1.xpose.msra.mxu0 0.0
        %1503 = vmatprep.subr.mxu0 0.0
        %1504 = vmatpush1.xpose.msra.mxu0 0.0
        %1505 = vmatprep.subr.mxu0 0.0
        %1506 = vmatpush1.xpose.msra.mxu0 0.0
        %1507 = vmatprep.subr.mxu0 0.0
        %1508 = vmatpush1.xpose.msra.mxu0 0.0
        %1509 = vmatprep.subr.mxu0 0.0
        %1510 = vmatpush1.xpose.msra.mxu0 0.0
        %1511 = vmatprep.subr.mxu0 0.0
        %1512 = vmatpush1.xpose.msra.mxu0 0.0
        %1513 = vmatprep.subr.mxu0 0.0
        %1514 = vmatpush1.xpose.msra.mxu0 0.0
        %1515 = vmatprep.subr.mxu0 0.0
        %1516 = vmatpush1.xpose.msra.mxu0 0.0
        %1517 = vmatprep.subr.mxu0 0.0
        %1518 = vmatpush1.xpose.msra.mxu0 0.0
        %1519 = vmatprep.subr.mxu0 0.0
        %1520 = vmatpush1.xpose.msra.mxu0 0.0
        %1521 = vmatprep.subr.mxu0 0.0
        %1522 = vmatpush1.xpose.msra.mxu0 0.0
        %1523 = vmatprep.subr.mxu0 0.0
        %1524 = vmatpush1.xpose.msra.mxu0 0.0
        %1525 = vmatprep.subr.mxu0 0.0
        %1526 = vmatpush1.xpose.msra.mxu0 0.0
        %1527 = vmatprep.subr.mxu0 0.0
        %1528 = vmatpush1.xpose.msra.mxu0 0.0
        %1529 = vmatprep.subr.mxu0 0.0
        %1530 = vmatpush1.xpose.msra.mxu0 0.0
        %1531 = vmatprep.subr.mxu0 0.0
        %1532 = vmatpush1.xpose.msra.mxu0 0.0
        %1533 = vmatprep.subr.mxu0 0.0
        %1534 = vmatpush1.xpose.msra.mxu0 0.0
        %1535 = vmatprep.subr.mxu0 0.0
        %1536 = vmatpush1.xpose.msra.mxu0 0.0
        %1537 = vmatprep.subr.mxu0 0.0
        %1538 = vmatpush1.xpose.msra.mxu0 0.0
        %1539 = vmatprep.subr.mxu0 0.0
        %1540 = vmatpush1.xpose.msra.mxu0 0.0
        %1541 = vmatprep.subr.mxu0 0.0
        %1542 = vmatpush1.xpose.msra.mxu0 0.0
        %1543 = vmatprep.subr.mxu0 0.0
        %1544 = vmatpush1.xpose.msra.mxu0 0.0
        %1545 = vmatprep.mubr.f32.mxu0 0.0
        %1546 = vmatmul.mubr.f32.gmra.mrb[0].mxu0 %v1476
        %v1547 = vpop.f32.mrb[0].mxu0
        %v1548 = vadd.f32 0.0, %v1547
        %v1549 = vpop.f32.mrb[0].mxu0
        %1550 = vdwg.mxu0
        %v1552 = vsel %vm982, %v1318, 0
        %v1555 = vsel %vm982, %v847, 0
        %1557 = vmatprep.subr.mxu0 0.0
        %1558 = vmatpush1.xpose.msra.mxu0 %v1555
        %1559 = vmatprep.subr.mxu0 0.0
        %1560 = vmatpush1.xpose.msra.mxu0 0.0
        %1561 = vmatprep.subr.mxu0 0.0
        %1562 = vmatpush1.xpose.msra.mxu0 0.0
        %1563 = vmatprep.subr.mxu0 0.0
        %1564 = vmatpush1.xpose.msra.mxu0 0.0
        %1565 = vmatprep.subr.mxu0 0.0
        %1566 = vmatpush1.xpose.msra.mxu0 0.0
        %1567 = vmatprep.subr.mxu0 0.0
        %1568 = vmatpush1.xpose.msra.mxu0 0.0
        %1569 = vmatprep.subr.mxu0 0.0
        %1570 = vmatpush1.xpose.msra.mxu0 0.0
        %1571 = vmatprep.subr.mxu0 0.0
        %1572 = vmatpush1.xpose.msra.mxu0 0.0
        %1573 = vmatprep.subr.mxu0 0.0
        %1574 = vmatpush1.xpose.msra.mxu0 0.0
        %1575 = vmatprep.subr.mxu0 0.0
        %1576 = vmatpush1.xpose.msra.mxu0 0.0
        %1577 = vmatprep.subr.mxu0 0.0
        %1578 = vmatpush1.xpose.msra.mxu0 0.0
        %1579 = vmatprep.subr.mxu0 0.0
        %1580 = vmatpush1.xpose.msra.mxu0 0.0
        %1581 = vmatprep.subr.mxu0 0.0
        %1582 = vmatpush1.xpose.msra.mxu0 0.0
        %1583 = vmatprep.subr.mxu0 0.0
        %1584 = vmatpush1.xpose.msra.mxu0 0.0
        %1585 = vmatprep.subr.mxu0 0.0
        %1586 = vmatpush1.xpose.msra.mxu0 0.0
        %1587 = vmatprep.subr.mxu0 0.0
        %1588 = vmatpush1.xpose.msra.mxu0 0.0
        %1589 = vmatprep.subr.mxu0 0.0
        %1590 = vmatpush1.xpose.msra.mxu0 0.0
        %1591 = vmatprep.subr.mxu0 0.0
        %1592 = vmatpush1.xpose.msra.mxu0 0.0
        %1593 = vmatprep.subr.mxu0 0.0
        %1594 = vmatpush1.xpose.msra.mxu0 0.0
        %1595 = vmatprep.subr.mxu0 0.0
        %1596 = vmatpush1.xpose.msra.mxu0 0.0
        %1597 = vmatprep.subr.mxu0 0.0
        %1598 = vmatpush1.xpose.msra.mxu0 0.0
        %1599 = vmatprep.subr.mxu0 0.0
        %1600 = vmatpush1.xpose.msra.mxu0 0.0
        %1601 = vmatprep.subr.mxu0 0.0
        %1602 = vmatpush1.xpose.msra.mxu0 0.0
        %1603 = vmatprep.subr.mxu0 0.0
        %1604 = vmatpush1.xpose.msra.mxu0 0.0
        %1605 = vmatprep.subr.mxu0 0.0
        %1606 = vmatpush1.xpose.msra.mxu0 0.0
        %1607 = vmatprep.subr.mxu0 0.0
        %1608 = vmatpush1.xpose.msra.mxu0 0.0
        %1609 = vmatprep.subr.mxu0 0.0
        %1610 = vmatpush1.xpose.msra.mxu0 0.0
        %1611 = vmatprep.subr.mxu0 0.0
        %1612 = vmatpush1.xpose.msra.mxu0 0.0
        %1613 = vmatprep.subr.mxu0 0.0
        %1614 = vmatpush1.xpose.msra.mxu0 0.0
        %1615 = vmatprep.subr.mxu0 0.0
        %1616 = vmatpush1.xpose.msra.mxu0 0.0
        %1617 = vmatprep.subr.mxu0 0.0
        %1618 = vmatpush1.xpose.msra.mxu0 0.0
        %1619 = vmatprep.subr.mxu0 0.0
        %1620 = vmatpush1.xpose.msra.mxu0 0.0
        %1621 = vmatprep.mubr.f32.mxu0 0.0
        %1622 = vmatmul.mubr.f32.gmra.mrb[0].mxu0 %v1552
        %v1623 = vpop.f32.mrb[0].mxu0
        %v1624 = vadd.f32 0.0, %v1623
        %v1625 = vpop.f32.mrb[0].mxu0
        %1626 = vdwg.mxu0
        %1627 = vst.msk [vmem:[#allocation2] sm:$0xff] %vm982, %v1396
        %1629 = vrot.lane.b32.xlu0 %v1472, 8
        %v1630 = vpop.permute.xlu0 %1629
        %vm1632 = vcmask 130112
        %1633 = vst.msk [vmem:[#allocation2] sm:$0xff] %vm1632, %v1630
        %1635 = vrot.lane.b32.xlu0 %v1548, 16
        %v1636 = vpop.permute.xlu0 %1635
        %vm1638 = vcmask 195712
        %1639 = vst.msk [vmem:[#allocation2] sm:$0xff] %vm1638, %v1636
        %1641 = vrot.lane.b32.xlu0 %v1624, 24
        %v1642 = vpop.permute.xlu0 %1641
        %vm1644 = vcmask 261312
        %1645 = vst.msk [vmem:[#allocation2] sm:$0xff] %vm1644, %v1642
        %v1646 = vld [vmem:[#allocation2] sm:$0xff]
        %v1647 = vld [vmem:[#allocation14] sm:$0xff]
        %v1648 = vld [vmem:[#allocation14 + $0x8] sm:$0xff]
        %v1649 = vld [vmem:[#allocation14 + $0x10] sm:$0xff]
        %v1650 = vld [vmem:[#allocation14 + $0x18] sm:$0xff]
        %v1652 = vsel %vm541, %v1646, 0
        %1654 = vmatprep.subr.mxu0 0.0
        %1655 = vmatpush1.msra.mxu0 %v1647
        %1656 = vmatprep.subr.mxu0 0.0
        %1657 = vmatpush1.msra.mxu0 %v1648
        %1658 = vmatprep.subr.mxu0 0.0
        %1659 = vmatpush1.msra.mxu0 %v1649
        %1660 = vmatprep.subr.mxu0 0.0
        %1661 = vmatpush1.msra.mxu0 %v1650
        %1662 = vmatprep.subr.mxu0 0.0
        %1663 = vmatpush1.msra.mxu0 0.0
        %1664 = vmatprep.subr.mxu0 0.0
        %1665 = vmatpush1.msra.mxu0 0.0
        %1666 = vmatprep.subr.mxu0 0.0
        %1667 = vmatpush1.msra.mxu0 0.0
        %1668 = vmatprep.subr.mxu0 0.0
        %1669 = vmatpush1.msra.mxu0 0.0
        %1670 = vmatprep.subr.mxu0 0.0
        %1671 = vmatpush1.msra.mxu0 0.0
        %1672 = vmatprep.subr.mxu0 0.0
        %1673 = vmatpush1.msra.mxu0 0.0
        %1674 = vmatprep.subr.mxu0 0.0
        %1675 = vmatpush1.msra.mxu0 0.0
        %1676 = vmatprep.subr.mxu0 0.0
        %1677 = vmatpush1.msra.mxu0 0.0
        %1678 = vmatprep.subr.mxu0 0.0
        %1679 = vmatpush1.msra.mxu0 0.0
        %1680 = vmatprep.subr.mxu0 0.0
        %1681 = vmatpush1.msra.mxu0 0.0
        %1682 = vmatprep.subr.mxu0 0.0
        %1683 = vmatpush1.msra.mxu0 0.0
        %1684 = vmatprep.subr.mxu0 0.0
        %1685 = vmatpush1.msra.mxu0 0.0
        %1686 = vmatprep.subr.mxu0 0.0
        %1687 = vmatpush1.msra.mxu0 0.0
        %1688 = vmatprep.subr.mxu0 0.0
        %1689 = vmatpush1.msra.mxu0 0.0
        %1690 = vmatprep.subr.mxu0 0.0
        %1691 = vmatpush1.msra.mxu0 0.0
        %1692 = vmatprep.subr.mxu0 0.0
        %1693 = vmatpush1.msra.mxu0 0.0
        %1694 = vmatprep.subr.mxu0 0.0
        %1695 = vmatpush1.msra.mxu0 0.0
        %1696 = vmatprep.subr.mxu0 0.0
        %1697 = vmatpush1.msra.mxu0 0.0
        %1698 = vmatprep.subr.mxu0 0.0
        %1699 = vmatpush1.msra.mxu0 0.0
        %1700 = vmatprep.subr.mxu0 0.0
        %1701 = vmatpush1.msra.mxu0 0.0
        %1702 = vmatprep.subr.mxu0 0.0
        %1703 = vmatpush1.msra.mxu0 0.0
        %1704 = vmatprep.subr.mxu0 0.0
        %1705 = vmatpush1.msra.mxu0 0.0
        %1706 = vmatprep.subr.mxu0 0.0
        %1707 = vmatpush1.msra.mxu0 0.0
        %1708 = vmatprep.subr.mxu0 0.0
        %1709 = vmatpush1.msra.mxu0 0.0
        %1710 = vmatprep.subr.mxu0 0.0
        %1711 = vmatpush1.msra.mxu0 0.0
        %1712 = vmatprep.subr.mxu0 0.0
        %1713 = vmatpush1.msra.mxu0 0.0
        %1714 = vmatprep.subr.mxu0 0.0
        %1715 = vmatpush1.msra.mxu0 0.0
        %1716 = vmatprep.subr.mxu0 0.0
        %1717 = vmatpush1.msra.mxu0 0.0
        %1718 = vmatprep.mubr.f32.mxu0 0.0
        %1719 = vmatmul.mubr.f32.gmra.mrb[0].mxu0 %v1652
        %v1720 = vpop.f32.mrb[0].mxu0
        %v1721 = vadd.f32 %v534, %v1720
        %v1722 = vpop.f32.mrb[0].mxu0
        %1723 = vdwg.mxu0
        %v1724 = vsel %vm541, %v1721, 0.0
        %1725 = vadd.xlane.f32.xlu0 %v1724
        %v1726 = vpop.xlane.xlu0 %1725
        %v1727 = vrcp.pop 32.0
        %v1728 = vmul.f32 %v1726, %v1727
        %v1729 = vsub.f32 %v1721, %v1728
        %v1730 = vmul.f32 %v1729, %v1729
        %v1731 = vsel %vm541, %v1730, 0.0
        %1732 = vadd.xlane.f32.xlu0 %v1731
        %v1733 = vpop.xlane.xlu0 %1732
        %v1734 = vmul.f32 %v1733, %v1727
        %v1735 = vadd.f32 %v1734, 1e-06
        %v1736 = vrsqrt.pop %v1735
        %v1737 = vmul.f32 %v1729, %v1736
        %v1738 = vld [vmem:[%s7] sm:$0x1]
        %v1740 = vlaneseq
        %v1741 = vshrl.u32 %v1740, 7
        %v1742 = vsub.s32 0, %v1741
        %v1743 = vrot.slane %v1738, %v1742
        %v1745 = vmul.f32 %v1737, %v1743
        %v1746 = vld [vmem:[%s8] sm:$0x1]
        %v1748 = vlaneseq
        %v1749 = vshrl.u32 %v1748, 7
        %v1750 = vsub.s32 0, %v1749
        %v1751 = vrot.slane %v1746, %v1750
        %v1753 = vadd.f32 %v1745, %v1751
        %1754 = vst.msk [vmem:[%s526] sm:$0xff] %vm541, %v1753
        %s1755 = sand.u32 %s264, 1
        %s1756 = scalar_lea.sflag [#allocation5], %s1755
        %s1757 = sand.u32 %s264, 1
        %s1758 = smul.addr %s1757, 8
        %s1759 = scalar_lea.vmem [#allocation15], %s1758
        %s1760 = sand.u32 %s292, 1
        %s1761 = scalar_lea.sflag [#allocation17], %s1760
        %s1762 = sand.u32 %s292, 1
        %s1763 = smul.addr %s1762, 32
        %s1764 = scalar_lea.vmem [#allocation16], %s1763
        // Predicated region
        $region85: #{tpu_custom_call.1} parent=55 // pred_check
          %p1765 = pneg %p274
        $region86: #{tpu_custom_call.1} parent=55 // pred_check_branch
          %1767 = sbr.rel (%p1765) target = $region88
        $region87: #{tpu_custom_call.1} parent=55 // pred_region
          %s1769 = ssub.s32 128, 128
          %1770 = vsyncadd %s1756, %s1769
          %s1771 = sadd.s32 %s41, %s40
          %s1772 = smul.addr %s1771, 128
          %s1773 = scalar_lea.hbm %s9, %s1772
          %s1775 = sshll.u32 %s1759, 4
          %s1776 = int_to_ptr.vmem [resolvable:$true] %s1775
          %1778 = dma.vmem_to_hbm [thread:$0]  %s1776, 128, %s1773, %s1756
        $region88: #{tpu_custom_call.1} parent=55 // pred_fallthru
          _
        // Predicated region
        $region89: #{tpu_custom_call.1} parent=55 // pred_check
          %p1779 = pneg %p302
        $region90: #{tpu_custom_call.1} parent=55 // pred_check_branch
          %1781 = sbr.rel (%p1779) target = $region92
        $region91: #{tpu_custom_call.1} parent=55 // pred_region
          %s1783 = ssub.s32 512, 512
          %1784 = vsyncadd %s1761, %s1783
          %s1785 = smul.addr %s40, 4
          %s1786 = sadd.s32 %s41, %s1785
          %s1787 = smul.addr %s1786, 128
          %s1788 = scalar_lea.hbm %s10, %s1787
          %s1789 = sshll.u32 %s1764, 4
          %s1790 = int_to_ptr.vmem [resolvable:$true] %s1789
          %1795 = dma.vmem_to_hbm [thread:$0]  %s1790, 512, %s1788, %s1761, 128, 128, 8
        $region92: #{tpu_custom_call.1} parent=55 // pred_fallthru
          _
      $region56: #{tpu_custom_call.1} parent=5 // pred_fallthru
        _
      %p1796 = scmp.le.s32.totalorder 2, %s31
      // Predicated region
      $region93: #{tpu_custom_call.1} parent=5 // pred_check
        %p1797 = pneg %p1796
      $region94: #{tpu_custom_call.1} parent=5 // pred_check_branch
        %1799 = sbr.rel (%p1797) target = $region96
      $region95: #{tpu_custom_call.1} parent=5 // pred_region
        %s1800 = ssub.s32 %s31, 2
        // Predicated region
        $region97: #{tpu_custom_call.1} parent=95 // pred_check
          %p1801 = pneg %p280
        $region98: #{tpu_custom_call.1} parent=95 // pred_check_branch
          %1803 = sbr.rel (%p1801) target = $region100
        $region99: #{tpu_custom_call.1} parent=95 // pred_region
          %s1804 = sand.u32 %s265, 1
          %s1805 = scalar_lea.sflag [#allocation5], %s1804
          %s1806 = sand.u32 %s265, 1
          %s1807 = smul.addr %s1806, 8
          %s1808 = scalar_lea.vmem [#allocation15], %s1807
          %1809 = dma.done %s1805, 128
        $region100: #{tpu_custom_call.1} parent=95 // pred_fallthru
          _
        // Predicated region
        $region101: #{tpu_custom_call.1} parent=95 // pred_check
          %p1810 = pneg %p308
        $region102: #{tpu_custom_call.1} parent=95 // pred_check_branch
          %1812 = sbr.rel (%p1810) target = $region104
        $region103: #{tpu_custom_call.1} parent=95 // pred_region
          %s1813 = sand.u32 %s293, 1
          %s1814 = scalar_lea.sflag [#allocation17], %s1813
          %s1815 = sand.u32 %s293, 1
          %s1816 = smul.addr %s1815, 32
          %s1817 = scalar_lea.vmem [#allocation16], %s1816
          %1818 = dma.done %s1814, 512
        $region104: #{tpu_custom_call.1} parent=95 // pred_fallthru
          _
      $region96: #{tpu_custom_call.1} parent=5 // pred_fallthru
        _
    $region6: #{tpu_custom_call.1} parent=1 // loop_footer
      %s35 = sadd.s32 1, %s31
    $region7: #{tpu_custom_call.1} parent=1 // loop_footer_branch
      %30 = sbr.rel target = $region3
    $region8: #{tpu_custom_call.1} parent=1 // loop_exit
      _
    %1819 = vsyncpa [#allocation4], 1
    %s1820 = scalar_lea.sflag [#allocation4], 1
    %1821 = vsyncpa %s1820, 1
    %1822 = vsyncpa [#allocation7], 1
    %s1823 = scalar_lea.sflag [#allocation7], 1
    %1824 = vsyncpa %s1823, 1
    %1825 = vsyncpa [#allocation10], 1
    %1826 = vsyncpa [#allocation13], 1
    %1827 = vsyncpa [#allocation5], 1
    %s1828 = scalar_lea.sflag [#allocation5], 1
    %1829 = vsyncpa %s1828, 1
    %1830 = vsyncpa [#allocation17], 1
    %s1831 = scalar_lea.sflag [#allocation17], 1
    %1832 = vsyncpa %s1831, 1

</llo_original>
